<compile_context>
chip_gen: v6e
topology: v6e:2x2x1
jax: 0.10.0
libtpu: 0.0.40
codegen_flags: <defaults>
</compile_context>

<pallas_src>
import math
import jax
import jax.numpy as jnp
from jax.experimental import pallas as pl
from jax.experimental.pallas import tpu as pltpu

BN_EPS = 1e-5
LEAKY_SLOPE = 0.1


def _leaky_relu(z):
    # max(z, 0.1*z): one vmul + one vmax (cheaper than cmp+select+mul).
    return jnp.maximum(z, LEAKY_SLOPE * z)


def _epilogue(z, scale, shift, out_dtype):
    # BN scale applied here (f32, VPU slot has slack under the MXU) instead of
    # being folded into W on the host (which would rewrite all of W in HBM).
    z = z * scale + shift
    return _leaky_relu(z).astype(out_dtype)


# ---------------------------------------------------------------------------
# Kernels
# ---------------------------------------------------------------------------
def _fc_single_block_kernel(x_ref, w_ref, scale_ref, shift_ref, o_ref):
    # Whole problem resident in VMEM: one MXU matmul + tiny epilogue.
    z = jnp.dot(x_ref[...], w_ref[...], preferred_element_type=jnp.float32)
    o_ref[...] = _epilogue(z, scale_ref[...], shift_ref[...], o_ref.dtype)


def _make_tiled_kernel(nk):
    """grid = (M tiles, N tiles, K tiles); K is the reduction ('arbitrary') axis.

    nk (number of K steps) is a Python constant, so the nk == 1 case needs no
    accumulator scratch at all, and for nk > 1 the final K step is fused
    (dot + epilogue) to avoid one tm*tn f32 store + reload per output tile.
    """
    if nk == 1:
        def kernel(x_ref, w_ref, scale_ref, shift_ref, o_ref):
            z = jnp.dot(x_ref[...], w_ref[...], preferred_element_type=jnp.float32)
            o_ref[...] = _epilogue(z, scale_ref[...], shift_ref[...], o_ref.dtype)
        return kernel

    def kernel(x_ref, w_ref, scale_ref, shift_ref, o_ref, acc_ref):
        k = pl.program_id(2)
        p = jnp.dot(x_ref[...], w_ref[...], preferred_element_type=jnp.float32)

        @pl.when(k == 0)
        def _():
            acc_ref[...] = p                      # no zero-init + add

        @pl.when(jnp.logical_and(k > 0, k < nk - 1))
        def _():
            acc_ref[...] = acc_ref[...] + p

        @pl.when(k == nk - 1)
        def _():
            z = acc_ref[...] + p                  # fused last K step
            o_ref[...] = _epilogue(z, scale_ref[...], shift_ref[...], o_ref.dtype)

    return kernel


# ---------------------------------------------------------------------------
# Wrapper
# ---------------------------------------------------------------------------
def _round_up(a, m):
    return ((a + m - 1) // m) * m


def _pick_tile(dim_padded, base, limit):
    """Largest multiple of `base` that divides `dim_padded` and is <= limit."""
    limit = max(base, min(limit, dim_padded))
    t = (limit // base) * base
    while t > base and dim_padded % t != 0:
        t -= base
    return t


def fc_block(x, w_t, b, gamma, beta, running_mean, running_var,
             *, tm=512, tn=1024, tk=1024, compute_dtype=jnp.bfloat16,
             single_block_limit_bytes=8 << 20,
             vmem_limit_bytes=32 << 20, vmem_tile_budget_bytes=24 << 20):
    """leaky_relu( (x @ w_t) * scale + shift ), BN/bias folded into scale/shift.

    * compute_dtype defaults to bf16 (MXU-native peak on v5e/v6e/v7x, f32
      accumulation); pass jnp.float32 / None to keep f32 operands.
    * The BN scale is applied in the f32 epilogue, so W is never rescaled (and
      can be pre-cast/reused by the caller with zero extra HBM passes).
    * Tiles are chosen as divisors of the hardware-rounded dims (avoids
      host-side jnp.pad for aligned shapes), clamped to a VMEM budget that is
      safe on every generation (v7x: 64 MiB physical / 32 MiB scoped per TC),
      and the parallel grid axes are guaranteed >= 2 blocks so megacore
      sharding has work for both TensorCores.
    """
    M, K = x.shape
    Kw, N = w_t.shape
    assert Kw == K
    out_dtype = x.dtype
    out_bytes = jnp.dtype(out_dtype).itemsize

    # Per-feature BN folding (running stats, eval mode):
    #   scale = gamma / sqrt(var + eps)
    #   shift = beta + (bias - mean) * scale
    scale = (gamma * jax.lax.rsqrt(running_var + BN_EPS)).astype(jnp.float32)
    shift = (beta + (b - running_mean) * scale).astype(jnp.float32)
    scale = scale.reshape(1, N)
    shift = shift.reshape(1, N)

    x_c = x if (compute_dtype is None or x.dtype == compute_dtype) else x.astype(compute_dtype)
    # NOTE: for repeated inference, pre-cast W to compute_dtype once outside.
    w_c = w_t if (compute_dtype is None or w_t.dtype == compute_dtype) else w_t.astype(compute_dtype)

    bx = jnp.dtype(x_c.dtype).itemsize
    bw = jnp.dtype(w_c.dtype).itemsize
    m_base = 8 if bx >= 4 else 16            # sublane packing of the M (row) axis

    cost = pl.CostEstimate(
        flops=2 * M * N * K,
        transcendentals=0,
        bytes_accessed=bx * M * K + bw * K * N + out_bytes * M * N + 8 * N)

    # ---- tiny / medium problems: one VMEM-resident block, no grid loop ----
    total_bytes = bx * M * K + bw * K * N + out_bytes * M * N + 8 * N
    if total_bytes <= single_block_limit_bytes:
        return pl.pallas_call(
            _fc_single_block_kernel,
            out_shape=jax.ShapeDtypeStruct((M, N), out_dtype),
            grid=(1,),
            in_specs=[
                pl.BlockSpec((M, K), lambda i: (0, 0)),
                pl.BlockSpec((K, N), lambda i: (0, 0)),
                pl.BlockSpec((1, N), lambda i: (0, 0)),
                pl.BlockSpec((1, N), lambda i: (0, 0)),
            ],
            out_specs=pl.BlockSpec((M, N), lambda i: (0, 0)),
            compiler_params=pltpu.CompilerParams(
                dimension_semantics=("arbitrary",),
                vmem_limit_bytes=vmem_limit_bytes),
            cost_estimate=cost,
        )(x_c, w_c, scale, shift)

    # ---- general case: tiled matmul, BN epilogue fused on the last K step --
    Mp = _round_up(M, m_base)
    Np = _round_up(N, 128)
    Kp = _round_up(K, 128)

    tm = _pick_tile(Mp, m_base, tm)
    tn = _pick_tile(Np, 128, tn)
    tk = _pick_tile(Kp, 128, tk)

    # VMEM budget: double-buffered input/output tiles + f32 accumulator.
    def footprint(tm_, tn_, tk_):
        return (2 * (tm_ * tk_ * bx + tk_ * tn_ * bw + 2 * tn_ * 4)
                + 2 * tm_ * tn_ * out_bytes + tm_ * tn_ * 4)

    while footprint(tm, tn, tk) > vmem_tile_budget_bytes:
        if tk >= tn and tk >= tm and tk > 128:
            tk = _pick_tile(Kp, 128, tk // 2)
        elif tn >= tm and tn > 128:
            tn = _pick_tile(Np, 128, tn // 2)
        elif tm > m_base:
            tm = _pick_tile(Mp, m_base, tm // 2)
        else:
            break

    # Megacore (v7x: 2 TensorCores/chip): guarantee >= 2 blocks on a parallel
    # axis so dimension_semantics can actually shard the grid across cores.
    if (Mp // tm) * (Np // tn) < 2:
        if Np // 128 >= 2:
            tn = _pick_tile(Np, 128, Np // 2)
        elif Mp // m_base >= 2:
            tm = _pick_tile(Mp, m_base, Mp // 2)

    grid = (Mp // tm, Np // tn, Kp // tk)
    nk = grid[2]

    # Pad only when dims are not already hardware-aligned (zero-padded K rows /
    # N columns contribute zero to the accumulation and are sliced off).
    x_p = x_c if (Mp == M and Kp == K) else jnp.pad(x_c, ((0, Mp - M), (0, Kp - K)))
    w_p = w_c if (Kp == K and Np == N) else jnp.pad(w_c, ((0, Kp - K), (0, Np - N)))
    scale_p = scale if Np == N else jnp.pad(scale, ((0, 0), (0, Np - N)))
    shift_p = shift if Np == N else jnp.pad(shift, ((0, 0), (0, Np - N)))

    scratch = [] if nk == 1 else [pltpu.VMEM((tm, tn), jnp.float32)]

    out = pl.pallas_call(
        _make_tiled_kernel(nk),
        out_shape=jax.ShapeDtypeStruct((Mp, Np), out_dtype),
        grid_spec=pltpu.PrefetchScalarGridSpec(
            num_scalar_prefetch=0,
            grid=grid,
            in_specs=[
                pl.BlockSpec((tm, tk), lambda i, j, k: (i, k)),   # x tile
                pl.BlockSpec((tk, tn), lambda i, j, k: (k, j)),   # W^T tile
                pl.BlockSpec((1, tn), lambda i, j, k: (0, j)),    # BN scale
                pl.BlockSpec((1, tn), lambda i, j, k: (0, j)),    # bias/BN shift
            ],
            out_specs=pl.BlockSpec((tm, tn), lambda i, j, k: (i, j)),
            scratch_shapes=scratch,
        ),
        compiler_params=pltpu.CompilerParams(
            dimension_semantics=("parallel", "parallel", "arbitrary"),
            vmem_limit_bytes=vmem_limit_bytes),
        cost_estimate=cost,
        # NOTE: if profiling shows exposed W-tile DMA at small tm, sweep
        # pipeline_mode=pl.Buffered(3) on the W BlockSpec (not a default).
    )(x_p, w_p, scale_p, shift_p)

    if Mp != M or Np != N:
        out = out[:M, :N]
    return out


# ---------------------------------------------------------------------------
# Init / reference (match the PyTorch module)
# ---------------------------------------------------------------------------
def init_params(key, input_dim, num_bottleneck):
    k_w, k_g = jax.random.split(key, 2)
    # Linear: kaiming_normal, a=0, mode='fan_out' -> std = sqrt(2 / fan_out)
    std_w = math.sqrt(2.0 / num_bottleneck)
    w = jax.random.normal(k_w, (num_bottleneck, input_dim), jnp.float32) * std_w
    b = jnp.zeros((num_bottleneck,), jnp.float32)
    # BatchNorm1d: weight ~ N(1.0, 0.02), bias = 0
    gamma = 1.0 + 0.02 * jax.random.normal(k_g, (num_bottleneck,), jnp.float32)
    beta = jnp.zeros((num_bottleneck,), jnp.float32)
    running_mean = jnp.zeros((num_bottleneck,), jnp.float32)
    running_var = jnp.ones((num_bottleneck,), jnp.float32)
    return w, b, gamma, beta, running_mean, running_var


def reference(x, w, b, gamma, beta, rm, rv):
    z = x @ w.T + b
    z = (z - rm) / jnp.sqrt(rv + BN_EPS) * gamma + beta
    return jnp.where(z >= 0, z, LEAKY_SLOPE * z)


def _cast_ref_inputs(x, w, dtype):
    # Mimic the kernel's operand cast so bf16 paths compare against a
    # like-for-like reference (products of bf16 values are exact in f32).
    if dtype is None:
        return x, w
    return x.astype(dtype).astype(jnp.float32), w.astype(dtype).astype(jnp.float32)


if __name__ == "__main__":
    key = jax.random.PRNGKey(0)
    keys = jax.random.split(key, 6)

    # --- Test 1: module-default dims, single-block fast path, bf16 MXU ------
    B, K, N = 8, 1024, 512
    x = jax.random.normal(keys[0], (B, K), jnp.float32)
    w, b, g, be, rm, rv = init_params(keys[1], K, N)
    out = jax.block_until_ready(fc_block(x, jnp.transpose(w), b, g, be, rm, rv))
    xr, wr = _cast_ref_inputs(x, w, jnp.bfloat16)
    ref = reference(xr, wr, b, g, be, rm, rv)
    assert out.shape == (B, N)
    assert jnp.allclose(out, ref, atol=1e-2, rtol=1e-2), "mismatch (single-block bf16)"

    # --- Test 2: non-divisible dims, forced tiled path, f32 compute ---------
    B2, K2, N2 = 96, 384, 320
    x2 = jax.random.normal(keys[2], (B2, K2), jnp.float32)
    w2, b2, g2, be2, rm2, rv2 = init_params(keys[3], K2, N2)
    out2 = jax.block_until_ready(
        fc_block(x2, jnp.transpose(w2), b2, g2, be2, rm2, rv2,
                 compute_dtype=jnp.float32, single_block_limit_bytes=0))
    ref2 = reference(x2, w2, b2, g2, be2, rm2, rv2)
    assert out2.shape == (B2, N2)
    assert jnp.allclose(out2, ref2, atol=2e-3, rtol=2e-3), "mismatch (tiled f32)"

    # --- Test 3: forced tiled path with a K-reduction loop (nk > 1), bf16 ---
    B3, K3, N3 = 64, 512, 256
    x3 = jax.random.normal(keys[4], (B3, K3), jnp.float32)
    w3, b3, g3, be3, rm3, rv3 = init_params(keys[5], K3, N3)
    out3 = jax.block_until_ready(
        fc_block(x3, jnp.transpose(w3), b3, g3, be3, rm3, rv3,
                 tk=128, single_block_limit_bytes=0))
    xr3, wr3 = _cast_ref_inputs(x3, w3, jnp.bfloat16)
    ref3 = reference(xr3, wr3, b3, g3, be3, rm3, rv3)
    assert out3.shape == (B3, N3)
    assert jnp.allclose(out3, ref3, atol=1e-2, rtol=1e-2), "mismatch (tiled bf16, nk>1)"

    print("KERNEL_OK")
</pallas_src>

<mosaic_0001>
module attributes {stable_mosaic.version = 11 : i64} {
  func.func @_fc_single_block_kernel(%arg0: i32, %arg1: memref<8x1024xbf16, #tpu.memory_space<vmem>>, %arg2: memref<1024x512xbf16, #tpu.memory_space<vmem>>, %arg3: memref<1x512xf32, #tpu.memory_space<vmem>>, %arg4: memref<1x512xf32, #tpu.memory_space<vmem>>, %arg5: memref<8x512xf32, #tpu.memory_space<vmem>>) attributes {dimension_semantics = [#tpu.dimension_semantics<arbitrary>], iteration_bounds = array<i64: 1>, scalar_prefetch = 0 : i64, scratch_operands = 0 : i64, tpu.core_type = #tpu.core_type<tc>, window_params = [{pipeline_mode = #tpu.pipeline_mode<synchronous>, transform_indices = @transform_0, window_bounds = array<i64: 8, 1024>}, {pipeline_mode = #tpu.pipeline_mode<synchronous>, transform_indices = @transform_1, window_bounds = array<i64: 1024, 512>}, {pipeline_mode = #tpu.pipeline_mode<synchronous>, transform_indices = @transform_2, window_bounds = array<i64: 1, 512>}, {pipeline_mode = #tpu.pipeline_mode<synchronous>, transform_indices = @transform_3, window_bounds = array<i64: 1, 512>}, {pipeline_mode = #tpu.pipeline_mode<synchronous>, transform_indices = @transform_4, window_bounds = array<i64: 8, 512>}]} {
    %c0 = arith.constant 0 : index
    %c0_0 = arith.constant 0 : index
    %0 = vector.load %arg1[%c0, %c0_0] : memref<8x1024xbf16, #tpu.memory_space<vmem>>, vector<8x1024xbf16>
    %c0_1 = arith.constant 0 : index
    %c0_2 = arith.constant 0 : index
    %1 = vector.load %arg2[%c0_1, %c0_2] : memref<1024x512xbf16, #tpu.memory_space<vmem>>, vector<1024x512xbf16>
    %cst = arith.constant dense<0.000000e+00> : vector<8x512xf32>
    %2 = tpu.matmul %0, %1, %cst {dimension_numbers = #tpu.dot_dimension_numbers<[1], [0], [0], [1], [0, 0, 1, 1], [], []>} : vector<8x1024xbf16>, vector<1024x512xbf16>, vector<8x512xf32> -> vector<8x512xf32>
    %c0_3 = arith.constant 0 : index
    %c0_4 = arith.constant 0 : index
    %3 = vector.load %arg3[%c0_3, %c0_4] : memref<1x512xf32, #tpu.memory_space<vmem>>, vector<1x512xf32>
    %c0_5 = arith.constant 0 : index
    %c0_6 = arith.constant 0 : index
    %4 = vector.load %arg4[%c0_5, %c0_6] : memref<1x512xf32, #tpu.memory_space<vmem>>, vector<1x512xf32>
    %5 = vector.broadcast %3 : vector<1x512xf32> to vector<8x512xf32>
    %6 = arith.mulf %2, %5 : vector<8x512xf32>
    %7 = vector.broadcast %4 : vector<1x512xf32> to vector<8x512xf32>
    %8 = arith.addf %6, %7 : vector<8x512xf32>
    %cst_7 = arith.constant 1.000000e-01 : f32
    %9 = vector.broadcast %cst_7 : f32 to vector<8x512xf32>
    %10 = arith.mulf %9, %8 : vector<8x512xf32>
    %11 = arith.maximumf %8, %10 : vector<8x512xf32>
    %c0_8 = arith.constant 0 : index
    %c0_9 = arith.constant 0 : index
    %12 = vector.load %arg5[%c0_8, %c0_9] : memref<8x512xf32, #tpu.memory_space<vmem>>, vector<8x512xf32>
    tpu.vector_store %arg5[%c0_8, %c0_9], %11 {strides = array<i32>} : memref<8x512xf32, #tpu.memory_space<vmem>>, vector<8x512xf32>,
    return
  }
  func.func @transform_0(%arg0: i32) -> (i32, i32) {
    %c0_i32 = arith.constant 0 : i32
    %c0_i32_0 = arith.constant 0 : i32
    %c0_i32_1 = arith.constant 0 : i32
    return %c0_i32, %c0_i32_0 : i32, i32
  }
  func.func @transform_1(%arg0: i32) -> (i32, i32) {
    %c0_i32 = arith.constant 0 : i32
    %c0_i32_0 = arith.constant 0 : i32
    %c0_i32_1 = arith.constant 0 : i32
    return %c0_i32, %c0_i32_0 : i32, i32
  }
  func.func @transform_2(%arg0: i32) -> (i32, i32) {
    %c0_i32 = arith.constant 0 : i32
    %c0_i32_0 = arith.constant 0 : i32
    %c0_i32_1 = arith.constant 0 : i32
    return %c0_i32, %c0_i32_0 : i32, i32
  }
  func.func @transform_3(%arg0: i32) -> (i32, i32) {
    %c0_i32 = arith.constant 0 : i32
    %c0_i32_0 = arith.constant 0 : i32
    %c0_i32_1 = arith.constant 0 : i32
    return %c0_i32, %c0_i32_0 : i32, i32
  }
  func.func @transform_4(%arg0: i32) -> (i32, i32) {
    %c0_i32 = arith.constant 0 : i32
    %c0_i32_0 = arith.constant 0 : i32
    %c0_i32_1 = arith.constant 0 : i32
    return %c0_i32, %c0_i32_0 : i32, i32
  }
}

</mosaic_0001>

<llo_original>
// kernel: tpu_custom_call.1
$region0: #{tpu_custom_call.1}
  #allocation0 [shape = 'u32[]', space=smem, size = 0x4, offset = 0x4, fixed_abs, tag = 'smem constant byte address 0x4 - core index']
  #allocation1 [shape = 'u32[144,128]{1,0:T(1,128)}', space=vmem, size = 0x12000, scoped, tag = 'internal scratch']
  %s0 = inlined_call_operand.hbm [shape: bf16[8,1024], index: 0, kind: input, shape index: {}]
  %s1 = inlined_call_operand.hbm [shape: bf16[1024,512], index: 1, kind: input, shape index: {}]
  %s2 = inlined_call_operand.hbm [shape: f32[1,512], index: 2, kind: input, shape index: {}]
  %s3 = inlined_call_operand.vmem [shape: f32[1,512], index: 3, kind: input, shape index: {}]
  %s4 = inlined_call_operand.hbm [shape: f32[8,512], index: 4, kind: output, shape index: {}]
  %s5 = sld [smem:[#allocation0]]
  $region38: #{tpu_custom_call.1} parent=0
    _
  %s7 = ssub.s32 1, %s5
  %s8 = scalar_select 0, %s7, %s5
  $region1: #{tpu_custom_call.1} parent=0
    #allocation2 [shape = 'u8[16384]{0}', space=vmem, size = 0x4000, scoped, tag = 'input window, operand 0, single buffered']
    #allocation3 [shape = 's32[1]{0}', space=sflag, size = 0x4, scoped, tag = 'scoped memory for tpu_custom_call.1']
    #allocation4 [shape = 's32[1]{0}', space=sflag, size = 0x4, scoped, tag = 'scoped memory for tpu_custom_call.1']
    #allocation5 [shape = 'u8[1048576]{0}', space=vmem, size = 0x100000, scoped, tag = 'input window, operand 1, single buffered']
    #allocation6 [shape = 's32[1]{0}', space=sflag, size = 0x4, scoped, tag = 'scoped memory for tpu_custom_call.1']
    #allocation7 [shape = 'u8[2048]{0}', space=vmem, size = 0x800, scoped, tag = 'input window, operand 2, single buffered']
    #allocation8 [shape = 'u8[16384]{0}', space=vmem, size = 0x4000, scoped, tag = 'output window, operand 0, single buffered']
    %9 = vsyncpa [#allocation3], 0
    %10 = vsyncpa [#allocation6], 0
    %11 = vsyncpa [#allocation4], 0
    // Predicated region
    $region2: #{tpu_custom_call.1} parent=1 // pred_check
      _
    $region3: #{tpu_custom_call.1} parent=1 // pred_check_branch
      %13 = sbr.rel (0) target = $region5
    $region4: #{tpu_custom_call.1} parent=1 // pred_region
      %s15 = ssub.s32 512, 512
      %16 = vsyncadd [#allocation3], %s15
      %s18 = sshll.u32 [#allocation2], 4
      %s19 = int_to_ptr.vmem [resolvable:$true] %s18
      %21 = dma.hbm_to_vmem [thread:$0]  %s0, 512, %s19, [#allocation3]
    $region5: #{tpu_custom_call.1} parent=1 // pred_fallthru
      _
    // Predicated region
    $region6: #{tpu_custom_call.1} parent=1 // pred_check
      _
    $region7: #{tpu_custom_call.1} parent=1 // pred_check_branch
      %23 = sbr.rel (0) target = $region9
    $region8: #{tpu_custom_call.1} parent=1 // pred_region
      %s25 = ssub.s32 32768, 32768
      %26 = vsyncadd [#allocation6], %s25
      %s27 = sshll.u32 [#allocation5], 4
      %s28 = int_to_ptr.vmem [resolvable:$true] %s27
      %33 = dma.hbm_to_vmem [thread:$0]  %s1, 32768, %s28, [#allocation6], 256, 256, 16
    $region9: #{tpu_custom_call.1} parent=1 // pred_fallthru
      _
    // Predicated region
    $region10: #{tpu_custom_call.1} parent=1 // pred_check
      _
    $region11: #{tpu_custom_call.1} parent=1 // pred_check_branch
      %35 = sbr.rel (0) target = $region13
    $region12: #{tpu_custom_call.1} parent=1 // pred_region
      %s37 = ssub.s32 64, 64
      %38 = vsyncadd [#allocation6], %s37
      %s40 = sshll.u32 [#allocation7], 4
      %s41 = int_to_ptr.vmem [resolvable:$true] %s40
      %43 = dma.hbm_to_vmem [thread:$0]  %s2, 64, %s41, [#allocation6]
    $region13: #{tpu_custom_call.1} parent=1 // pred_fallthru
      _
    // Predicated region
    $region14: #{tpu_custom_call.1} parent=1 // pred_check
      _
    $region15: #{tpu_custom_call.1} parent=1 // pred_check_branch
      %45 = sbr.rel (0) target = $region17
    $region16: #{tpu_custom_call.1} parent=1 // pred_region
      _
    $region17: #{tpu_custom_call.1} parent=1 // pred_fallthru
      _
    // Predicated region
    $region18: #{tpu_custom_call.1} parent=1 // pred_check
      _
    $region19: #{tpu_custom_call.1} parent=1 // pred_check_branch
      %47 = sbr.rel (0) target = $region21
    $region20: #{tpu_custom_call.1} parent=1 // pred_region
      %48 = dma.done [#allocation3], 512
    $region21: #{tpu_custom_call.1} parent=1 // pred_fallthru
      _
    // Predicated region
    $region22: #{tpu_custom_call.1} parent=1 // pred_check
      _
    $region23: #{tpu_custom_call.1} parent=1 // pred_check_branch
      %50 = sbr.rel (0) target = $region25
    $region24: #{tpu_custom_call.1} parent=1 // pred_region
      %51 = dma.done [#allocation6], 32768
    $region25: #{tpu_custom_call.1} parent=1 // pred_fallthru
      _
    // Predicated region
    $region26: #{tpu_custom_call.1} parent=1 // pred_check
      _
    $region27: #{tpu_custom_call.1} parent=1 // pred_check_branch
      %53 = sbr.rel (0) target = $region29
    $region28: #{tpu_custom_call.1} parent=1 // pred_region
      %54 = dma.done [#allocation6], 64
    $region29: #{tpu_custom_call.1} parent=1 // pred_fallthru
      _
    %v55 = vld [vmem:[#allocation2] sm:$0xff]
    %v56 = vld [vmem:[#allocation2 + $0x8] sm:$0xff]
    %v57 = vld [vmem:[#allocation2 + $0x10] sm:$0xff]
    %v58 = vld [vmem:[#allocation2 + $0x18] sm:$0xff]
    %v59 = vld [vmem:[#allocation5] sm:$0xff]
    %v60 = vld [vmem:[#allocation5 + $0x8] sm:$0xff]
    %v61 = vld [vmem:[#allocation5 + $0x10] sm:$0xff]
    %v62 = vld [vmem:[#allocation5 + $0x18] sm:$0xff]
    %v63 = vld [vmem:[#allocation5 + $0x20] sm:$0xff]
    %v64 = vld [vmem:[#allocation5 + $0x28] sm:$0xff]
    %v65 = vld [vmem:[#allocation5 + $0x30] sm:$0xff]
    %v66 = vld [vmem:[#allocation5 + $0x38] sm:$0xff]
    %v67 = vld [vmem:[#allocation5 + $0x40] sm:$0xff]
    %v68 = vld [vmem:[#allocation5 + $0x48] sm:$0xff]
    %v69 = vld [vmem:[#allocation5 + $0x50] sm:$0xff]
    %v70 = vld [vmem:[#allocation5 + $0x58] sm:$0xff]
    %v71 = vld [vmem:[#allocation5 + $0x60] sm:$0xff]
    %v72 = vld [vmem:[#allocation5 + $0x68] sm:$0xff]
    %v73 = vld [vmem:[#allocation5 + $0x70] sm:$0xff]
    %v74 = vld [vmem:[#allocation5 + $0x78] sm:$0xff]
    %v75 = vld [vmem:[#allocation5 + $0x80] sm:$0xff]
    %v76 = vld [vmem:[#allocation5 + $0x88] sm:$0xff]
    %v77 = vld [vmem:[#allocation5 + $0x90] sm:$0xff]
    %v78 = vld [vmem:[#allocation5 + $0x98] sm:$0xff]
    %v79 = vld [vmem:[#allocation5 + $0xa0] sm:$0xff]
    %v80 = vld [vmem:[#allocation5 + $0xa8] sm:$0xff]
    %v81 = vld [vmem:[#allocation5 + $0xb0] sm:$0xff]
    %v82 = vld [vmem:[#allocation5 + $0xb8] sm:$0xff]
    %v83 = vld [vmem:[#allocation5 + $0xc0] sm:$0xff]
    %v84 = vld [vmem:[#allocation5 + $0xc8] sm:$0xff]
    %v85 = vld [vmem:[#allocation5 + $0xd0] sm:$0xff]
    %v86 = vld [vmem:[#allocation5 + $0xd8] sm:$0xff]
    %v87 = vld [vmem:[#allocation5 + $0xe0] sm:$0xff]
    %v88 = vld [vmem:[#allocation5 + $0xe8] sm:$0xff]
    %v89 = vld [vmem:[#allocation5 + $0xf0] sm:$0xff]
    %v90 = vld [vmem:[#allocation5 + $0xf8] sm:$0xff]
    %v91 = vld [vmem:[#allocation5 + $0x100] sm:$0xff]
    %v92 = vld [vmem:[#allocation5 + $0x108] sm:$0xff]
    %v93 = vld [vmem:[#allocation5 + $0x110] sm:$0xff]
    %v94 = vld [vmem:[#allocation5 + $0x118] sm:$0xff]
    %v95 = vld [vmem:[#allocation5 + $0x120] sm:$0xff]
    %v96 = vld [vmem:[#allocation5 + $0x128] sm:$0xff]
    %v97 = vld [vmem:[#allocation5 + $0x130] sm:$0xff]
    %v98 = vld [vmem:[#allocation5 + $0x138] sm:$0xff]
    %v99 = vld [vmem:[#allocation5 + $0x140] sm:$0xff]
    %v100 = vld [vmem:[#allocation5 + $0x148] sm:$0xff]
    %v101 = vld [vmem:[#allocation5 + $0x150] sm:$0xff]
    %v102 = vld [vmem:[#allocation5 + $0x158] sm:$0xff]
    %v103 = vld [vmem:[#allocation5 + $0x160] sm:$0xff]
    %v104 = vld [vmem:[#allocation5 + $0x168] sm:$0xff]
    %v105 = vld [vmem:[#allocation5 + $0x170] sm:$0xff]
    %v106 = vld [vmem:[#allocation5 + $0x178] sm:$0xff]
    %v107 = vld [vmem:[#allocation5 + $0x180] sm:$0xff]
    %v108 = vld [vmem:[#allocation5 + $0x188] sm:$0xff]
    %v109 = vld [vmem:[#allocation5 + $0x190] sm:$0xff]
    %v110 = vld [vmem:[#allocation5 + $0x198] sm:$0xff]
    %v111 = vld [vmem:[#allocation5 + $0x1a0] sm:$0xff]
    %v112 = vld [vmem:[#allocation5 + $0x1a8] sm:$0xff]
    %v113 = vld [vmem:[#allocation5 + $0x1b0] sm:$0xff]
    %v114 = vld [vmem:[#allocation5 + $0x1b8] sm:$0xff]
    %v115 = vld [vmem:[#allocation5 + $0x1c0] sm:$0xff]
    %v116 = vld [vmem:[#allocation5 + $0x1c8] sm:$0xff]
    %v117 = vld [vmem:[#allocation5 + $0x1d0] sm:$0xff]
    %v118 = vld [vmem:[#allocation5 + $0x1d8] sm:$0xff]
    %v119 = vld [vmem:[#allocation5 + $0x1e0] sm:$0xff]
    %v120 = vld [vmem:[#allocation5 + $0x1e8] sm:$0xff]
    %v121 = vld [vmem:[#allocation5 + $0x1f0] sm:$0xff]
    %v122 = vld [vmem:[#allocation5 + $0x1f8] sm:$0xff]
    %v123 = vld [vmem:[#allocation5 + $0x200] sm:$0xff]
    %v124 = vld [vmem:[#allocation5 + $0x208] sm:$0xff]
    %v125 = vld [vmem:[#allocation5 + $0x210] sm:$0xff]
    %v126 = vld [vmem:[#allocation5 + $0x218] sm:$0xff]
    %v127 = vld [vmem:[#allocation5 + $0x220] sm:$0xff]
    %v128 = vld [vmem:[#allocation5 + $0x228] sm:$0xff]
    %v129 = vld [vmem:[#allocation5 + $0x230] sm:$0xff]
    %v130 = vld [vmem:[#allocation5 + $0x238] sm:$0xff]
    %v131 = vld [vmem:[#allocation5 + $0x240] sm:$0xff]
    %v132 = vld [vmem:[#allocation5 + $0x248] sm:$0xff]
    %v133 = vld [vmem:[#allocation5 + $0x250] sm:$0xff]
    %v134 = vld [vmem:[#allocation5 + $0x258] sm:$0xff]
    %v135 = vld [vmem:[#allocation5 + $0x260] sm:$0xff]
    %v136 = vld [vmem:[#allocation5 + $0x268] sm:$0xff]
    %v137 = vld [vmem:[#allocation5 + $0x270] sm:$0xff]
    %v138 = vld [vmem:[#allocation5 + $0x278] sm:$0xff]
    %v139 = vld [vmem:[#allocation5 + $0x280] sm:$0xff]
    %v140 = vld [vmem:[#allocation5 + $0x288] sm:$0xff]
    %v141 = vld [vmem:[#allocation5 + $0x290] sm:$0xff]
    %v142 = vld [vmem:[#allocation5 + $0x298] sm:$0xff]
    %v143 = vld [vmem:[#allocation5 + $0x2a0] sm:$0xff]
    %v144 = vld [vmem:[#allocation5 + $0x2a8] sm:$0xff]
    %v145 = vld [vmem:[#allocation5 + $0x2b0] sm:$0xff]
    %v146 = vld [vmem:[#allocation5 + $0x2b8] sm:$0xff]
    %v147 = vld [vmem:[#allocation5 + $0x2c0] sm:$0xff]
    %v148 = vld [vmem:[#allocation5 + $0x2c8] sm:$0xff]
    %v149 = vld [vmem:[#allocation5 + $0x2d0] sm:$0xff]
    %v150 = vld [vmem:[#allocation5 + $0x2d8] sm:$0xff]
    %v151 = vld [vmem:[#allocation5 + $0x2e0] sm:$0xff]
    %v152 = vld [vmem:[#allocation5 + $0x2e8] sm:$0xff]
    %v153 = vld [vmem:[#allocation5 + $0x2f0] sm:$0xff]
    %v154 = vld [vmem:[#allocation5 + $0x2f8] sm:$0xff]
    %v155 = vld [vmem:[#allocation5 + $0x300] sm:$0xff]
    %v156 = vld [vmem:[#allocation5 + $0x308] sm:$0xff]
    %v157 = vld [vmem:[#allocation5 + $0x310] sm:$0xff]
    %v158 = vld [vmem:[#allocation5 + $0x318] sm:$0xff]
    %v159 = vld [vmem:[#allocation5 + $0x320] sm:$0xff]
    %v160 = vld [vmem:[#allocation5 + $0x328] sm:$0xff]
    %v161 = vld [vmem:[#allocation5 + $0x330] sm:$0xff]
    %v162 = vld [vmem:[#allocation5 + $0x338] sm:$0xff]
    %v163 = vld [vmem:[#allocation5 + $0x340] sm:$0xff]
    %v164 = vld [vmem:[#allocation5 + $0x348] sm:$0xff]
    %v165 = vld [vmem:[#allocation5 + $0x350] sm:$0xff]
    %v166 = vld [vmem:[#allocation5 + $0x358] sm:$0xff]
    %v167 = vld [vmem:[#allocation5 + $0x360] sm:$0xff]
    %v168 = vld [vmem:[#allocation5 + $0x368] sm:$0xff]
    %v169 = vld [vmem:[#allocation5 + $0x370] sm:$0xff]
    %v170 = vld [vmem:[#allocation5 + $0x378] sm:$0xff]
    %v171 = vld [vmem:[#allocation5 + $0x380] sm:$0xff]
    %v172 = vld [vmem:[#allocation5 + $0x388] sm:$0xff]
    %v173 = vld [vmem:[#allocation5 + $0x390] sm:$0xff]
    %v174 = vld [vmem:[#allocation5 + $0x398] sm:$0xff]
    %v175 = vld [vmem:[#allocation5 + $0x3a0] sm:$0xff]
    %v176 = vld [vmem:[#allocation5 + $0x3a8] sm:$0xff]
    %v177 = vld [vmem:[#allocation5 + $0x3b0] sm:$0xff]
    %v178 = vld [vmem:[#allocation5 + $0x3b8] sm:$0xff]
    %v179 = vld [vmem:[#allocation5 + $0x3c0] sm:$0xff]
    %v180 = vld [vmem:[#allocation5 + $0x3c8] sm:$0xff]
    %v181 = vld [vmem:[#allocation5 + $0x3d0] sm:$0xff]
    %v182 = vld [vmem:[#allocation5 + $0x3d8] sm:$0xff]
    %v183 = vld [vmem:[#allocation5 + $0x3e0] sm:$0xff]
    %v184 = vld [vmem:[#allocation5 + $0x3e8] sm:$0xff]
    %v185 = vld [vmem:[#allocation5 + $0x3f0] sm:$0xff]
    %v186 = vld [vmem:[#allocation5 + $0x3f8] sm:$0xff]
    %v187 = vld [vmem:[#allocation5 + $0x400] sm:$0xff]
    %v188 = vld [vmem:[#allocation5 + $0x408] sm:$0xff]
    %v189 = vld [vmem:[#allocation5 + $0x410] sm:$0xff]
    %v190 = vld [vmem:[#allocation5 + $0x418] sm:$0xff]
    %v191 = vld [vmem:[#allocation5 + $0x420] sm:$0xff]
    %v192 = vld [vmem:[#allocation5 + $0x428] sm:$0xff]
    %v193 = vld [vmem:[#allocation5 + $0x430] sm:$0xff]
    %v194 = vld [vmem:[#allocation5 + $0x438] sm:$0xff]
    %v195 = vld [vmem:[#allocation5 + $0x440] sm:$0xff]
    %v196 = vld [vmem:[#allocation5 + $0x448] sm:$0xff]
    %v197 = vld [vmem:[#allocation5 + $0x450] sm:$0xff]
    %v198 = vld [vmem:[#allocation5 + $0x458] sm:$0xff]
    %v199 = vld [vmem:[#allocation5 + $0x460] sm:$0xff]
    %v200 = vld [vmem:[#allocation5 + $0x468] sm:$0xff]
    %v201 = vld [vmem:[#allocation5 + $0x470] sm:$0xff]
    %v202 = vld [vmem:[#allocation5 + $0x478] sm:$0xff]
    %v203 = vld [vmem:[#allocation5 + $0x480] sm:$0xff]
    %v204 = vld [vmem:[#allocation5 + $0x488] sm:$0xff]
    %v205 = vld [vmem:[#allocation5 + $0x490] sm:$0xff]
    %v206 = vld [vmem:[#allocation5 + $0x498] sm:$0xff]
    %v207 = vld [vmem:[#allocation5 + $0x4a0] sm:$0xff]
    %v208 = vld [vmem:[#allocation5 + $0x4a8] sm:$0xff]
    %v209 = vld [vmem:[#allocation5 + $0x4b0] sm:$0xff]
    %v210 = vld [vmem:[#allocation5 + $0x4b8] sm:$0xff]
    %v211 = vld [vmem:[#allocation5 + $0x4c0] sm:$0xff]
    %v212 = vld [vmem:[#allocation5 + $0x4c8] sm:$0xff]
    %v213 = vld [vmem:[#allocation5 + $0x4d0] sm:$0xff]
    %v214 = vld [vmem:[#allocation5 + $0x4d8] sm:$0xff]
    %v215 = vld [vmem:[#allocation5 + $0x4e0] sm:$0xff]
    %v216 = vld [vmem:[#allocation5 + $0x4e8] sm:$0xff]
    %v217 = vld [vmem:[#allocation5 + $0x4f0] sm:$0xff]
    %v218 = vld [vmem:[#allocation5 + $0x4f8] sm:$0xff]
    %v219 = vld [vmem:[#allocation5 + $0x500] sm:$0xff]
    %v220 = vld [vmem:[#allocation5 + $0x508] sm:$0xff]
    %v221 = vld [vmem:[#allocation5 + $0x510] sm:$0xff]
    %v222 = vld [vmem:[#allocation5 + $0x518] sm:$0xff]
    %v223 = vld [vmem:[#allocation5 + $0x520] sm:$0xff]
    %v224 = vld [vmem:[#allocation5 + $0x528] sm:$0xff]
    %v225 = vld [vmem:[#allocation5 + $0x530] sm:$0xff]
    %v226 = vld [vmem:[#allocation5 + $0x538] sm:$0xff]
    %v227 = vld [vmem:[#allocation5 + $0x540] sm:$0xff]
    %v228 = vld [vmem:[#allocation5 + $0x548] sm:$0xff]
    %v229 = vld [vmem:[#allocation5 + $0x550] sm:$0xff]
    %v230 = vld [vmem:[#allocation5 + $0x558] sm:$0xff]
    %v231 = vld [vmem:[#allocation5 + $0x560] sm:$0xff]
    %v232 = vld [vmem:[#allocation5 + $0x568] sm:$0xff]
    %v233 = vld [vmem:[#allocation5 + $0x570] sm:$0xff]
    %v234 = vld [vmem:[#allocation5 + $0x578] sm:$0xff]
    %v235 = vld [vmem:[#allocation5 + $0x580] sm:$0xff]
    %v236 = vld [vmem:[#allocation5 + $0x588] sm:$0xff]
    %v237 = vld [vmem:[#allocation5 + $0x590] sm:$0xff]
    %v238 = vld [vmem:[#allocation5 + $0x598] sm:$0xff]
    %v239 = vld [vmem:[#allocation5 + $0x5a0] sm:$0xff]
    %v240 = vld [vmem:[#allocation5 + $0x5a8] sm:$0xff]
    %v241 = vld [vmem:[#allocation5 + $0x5b0] sm:$0xff]
    %v242 = vld [vmem:[#allocation5 + $0x5b8] sm:$0xff]
    %v243 = vld [vmem:[#allocation5 + $0x5c0] sm:$0xff]
    %v244 = vld [vmem:[#allocation5 + $0x5c8] sm:$0xff]
    %v245 = vld [vmem:[#allocation5 + $0x5d0] sm:$0xff]
    %v246 = vld [vmem:[#allocation5 + $0x5d8] sm:$0xff]
    %v247 = vld [vmem:[#allocation5 + $0x5e0] sm:$0xff]
    %v248 = vld [vmem:[#allocation5 + $0x5e8] sm:$0xff]
    %v249 = vld [vmem:[#allocation5 + $0x5f0] sm:$0xff]
    %v250 = vld [vmem:[#allocation5 + $0x5f8] sm:$0xff]
    %v251 = vld [vmem:[#allocation5 + $0x600] sm:$0xff]
    %v252 = vld [vmem:[#allocation5 + $0x608] sm:$0xff]
    %v253 = vld [vmem:[#allocation5 + $0x610] sm:$0xff]
    %v254 = vld [vmem:[#allocation5 + $0x618] sm:$0xff]
    %v255 = vld [vmem:[#allocation5 + $0x620] sm:$0xff]
    %v256 = vld [vmem:[#allocation5 + $0x628] sm:$0xff]
    %v257 = vld [vmem:[#allocation5 + $0x630] sm:$0xff]
    %v258 = vld [vmem:[#allocation5 + $0x638] sm:$0xff]
    %v259 = vld [vmem:[#allocation5 + $0x640] sm:$0xff]
    %v260 = vld [vmem:[#allocation5 + $0x648] sm:$0xff]
    %v261 = vld [vmem:[#allocation5 + $0x650] sm:$0xff]
    %v262 = vld [vmem:[#allocation5 + $0x658] sm:$0xff]
    %v263 = vld [vmem:[#allocation5 + $0x660] sm:$0xff]
    %v264 = vld [vmem:[#allocation5 + $0x668] sm:$0xff]
    %v265 = vld [vmem:[#allocation5 + $0x670] sm:$0xff]
    %v266 = vld [vmem:[#allocation5 + $0x678] sm:$0xff]
    %v267 = vld [vmem:[#allocation5 + $0x680] sm:$0xff]
    %v268 = vld [vmem:[#allocation5 + $0x688] sm:$0xff]
    %v269 = vld [vmem:[#allocation5 + $0x690] sm:$0xff]
    %v270 = vld [vmem:[#allocation5 + $0x698] sm:$0xff]
    %v271 = vld [vmem:[#allocation5 + $0x6a0] sm:$0xff]
    %v272 = vld [vmem:[#allocation5 + $0x6a8] sm:$0xff]
    %v273 = vld [vmem:[#allocation5 + $0x6b0] sm:$0xff]
    %v274 = vld [vmem:[#allocation5 + $0x6b8] sm:$0xff]
    %v275 = vld [vmem:[#allocation5 + $0x6c0] sm:$0xff]
    %v276 = vld [vmem:[#allocation5 + $0x6c8] sm:$0xff]
    %v277 = vld [vmem:[#allocation5 + $0x6d0] sm:$0xff]
    %v278 = vld [vmem:[#allocation5 + $0x6d8] sm:$0xff]
    %v279 = vld [vmem:[#allocation5 + $0x6e0] sm:$0xff]
    %v280 = vld [vmem:[#allocation5 + $0x6e8] sm:$0xff]
    %v281 = vld [vmem:[#allocation5 + $0x6f0] sm:$0xff]
    %v282 = vld [vmem:[#allocation5 + $0x6f8] sm:$0xff]
    %v283 = vld [vmem:[#allocation5 + $0x700] sm:$0xff]
    %v284 = vld [vmem:[#allocation5 + $0x708] sm:$0xff]
    %v285 = vld [vmem:[#allocation5 + $0x710] sm:$0xff]
    %v286 = vld [vmem:[#allocation5 + $0x718] sm:$0xff]
    %v287 = vld [vmem:[#allocation5 + $0x720] sm:$0xff]
    %v288 = vld [vmem:[#allocation5 + $0x728] sm:$0xff]
    %v289 = vld [vmem:[#allocation5 + $0x730] sm:$0xff]
    %v290 = vld [vmem:[#allocation5 + $0x738] sm:$0xff]
    %v291 = vld [vmem:[#allocation5 + $0x740] sm:$0xff]
    %v292 = vld [vmem:[#allocation5 + $0x748] sm:$0xff]
    %v293 = vld [vmem:[#allocation5 + $0x750] sm:$0xff]
    %v294 = vld [vmem:[#allocation5 + $0x758] sm:$0xff]
    %v295 = vld [vmem:[#allocation5 + $0x760] sm:$0xff]
    %v296 = vld [vmem:[#allocation5 + $0x768] sm:$0xff]
    %v297 = vld [vmem:[#allocation5 + $0x770] sm:$0xff]
    %v298 = vld [vmem:[#allocation5 + $0x778] sm:$0xff]
    %v299 = vld [vmem:[#allocation5 + $0x780] sm:$0xff]
    %v300 = vld [vmem:[#allocation5 + $0x788] sm:$0xff]
    %v301 = vld [vmem:[#allocation5 + $0x790] sm:$0xff]
    %v302 = vld [vmem:[#allocation5 + $0x798] sm:$0xff]
    %v303 = vld [vmem:[#allocation5 + $0x7a0] sm:$0xff]
    %v304 = vld [vmem:[#allocation5 + $0x7a8] sm:$0xff]
    %v305 = vld [vmem:[#allocation5 + $0x7b0] sm:$0xff]
    %v306 = vld [vmem:[#allocation5 + $0x7b8] sm:$0xff]
    %v307 = vld [vmem:[#allocation5 + $0x7c0] sm:$0xff]
    %v308 = vld [vmem:[#allocation5 + $0x7c8] sm:$0xff]
    %v309 = vld [vmem:[#allocation5 + $0x7d0] sm:$0xff]
    %v310 = vld [vmem:[#allocation5 + $0x7d8] sm:$0xff]
    %v311 = vld [vmem:[#allocation5 + $0x7e0] sm:$0xff]
    %v312 = vld [vmem:[#allocation5 + $0x7e8] sm:$0xff]
    %v313 = vld [vmem:[#allocation5 + $0x7f0] sm:$0xff]
    %v314 = vld [vmem:[#allocation5 + $0x7f8] sm:$0xff]
    %v319 = vunpack.c.l.b16 %v55
    %v320 = vunpack.c.h.b16 %v55
    %v321 = vunpack.c.l.b16 %v56
    %v322 = vunpack.c.h.b16 %v56
    %v323 = vunpack.c.l.b16 %v57
    %v324 = vunpack.c.h.b16 %v57
    %v325 = vunpack.c.l.b16 %v58
    %v326 = vunpack.c.h.b16 %v58
    %v327 = vpack.c.b16 %v319, %v319
    %v328 = vpack.c.b16 %v320, %v320
    %v329 = vpack.c.b16 %v321, %v321
    %v330 = vpack.c.b16 %v322, %v322
    %v331 = vpack.c.b16 %v323, %v323
    %v332 = vpack.c.b16 %v324, %v324
    %v333 = vpack.c.b16 %v325, %v325
    %v334 = vpack.c.b16 %v326, %v326
    %v599 = vunpack.c.l.b16 %v59
    %v600 = vunpack.c.h.b16 %v59
    %v601 = vunpack.c.l.b16 %v60
    %v602 = vunpack.c.h.b16 %v60
    %v603 = vunpack.c.l.b16 %v61
    %v604 = vunpack.c.h.b16 %v61
    %v605 = vunpack.c.l.b16 %v62
    %v606 = vunpack.c.h.b16 %v62
    %v607 = vunpack.c.l.b16 %v63
    %v608 = vunpack.c.h.b16 %v63
    %v609 = vunpack.c.l.b16 %v64
    %v610 = vunpack.c.h.b16 %v64
    %v611 = vunpack.c.l.b16 %v65
    %v612 = vunpack.c.h.b16 %v65
    %v613 = vunpack.c.l.b16 %v66
    %v614 = vunpack.c.h.b16 %v66
    %v615 = vunpack.c.l.b16 %v67
    %v616 = vunpack.c.h.b16 %v67
    %v617 = vunpack.c.l.b16 %v68
    %v618 = vunpack.c.h.b16 %v68
    %v619 = vunpack.c.l.b16 %v69
    %v620 = vunpack.c.h.b16 %v69
    %v621 = vunpack.c.l.b16 %v70
    %v622 = vunpack.c.h.b16 %v70
    %v623 = vunpack.c.l.b16 %v71
    %v624 = vunpack.c.h.b16 %v71
    %v625 = vunpack.c.l.b16 %v72
    %v626 = vunpack.c.h.b16 %v72
    %v627 = vunpack.c.l.b16 %v73
    %v628 = vunpack.c.h.b16 %v73
    %v629 = vunpack.c.l.b16 %v74
    %v630 = vunpack.c.h.b16 %v74
    %v631 = vunpack.c.l.b16 %v75
    %v632 = vunpack.c.h.b16 %v75
    %v633 = vunpack.c.l.b16 %v76
    %v634 = vunpack.c.h.b16 %v76
    %v635 = vunpack.c.l.b16 %v77
    %v636 = vunpack.c.h.b16 %v77
    %v637 = vunpack.c.l.b16 %v78
    %v638 = vunpack.c.h.b16 %v78
    %v639 = vunpack.c.l.b16 %v79
    %v640 = vunpack.c.h.b16 %v79
    %v641 = vunpack.c.l.b16 %v80
    %v642 = vunpack.c.h.b16 %v80
    %v643 = vunpack.c.l.b16 %v81
    %v644 = vunpack.c.h.b16 %v81
    %v645 = vunpack.c.l.b16 %v82
    %v646 = vunpack.c.h.b16 %v82
    %v647 = vunpack.c.l.b16 %v83
    %v648 = vunpack.c.h.b16 %v83
    %v649 = vunpack.c.l.b16 %v84
    %v650 = vunpack.c.h.b16 %v84
    %v651 = vunpack.c.l.b16 %v85
    %v652 = vunpack.c.h.b16 %v85
    %v653 = vunpack.c.l.b16 %v86
    %v654 = vunpack.c.h.b16 %v86
    %v655 = vunpack.c.l.b16 %v87
    %v656 = vunpack.c.h.b16 %v87
    %v657 = vunpack.c.l.b16 %v88
    %v658 = vunpack.c.h.b16 %v88
    %v659 = vunpack.c.l.b16 %v89
    %v660 = vunpack.c.h.b16 %v89
    %v661 = vunpack.c.l.b16 %v90
    %v662 = vunpack.c.h.b16 %v90
    %v663 = vunpack.c.l.b16 %v91
    %v664 = vunpack.c.h.b16 %v91
    %v665 = vunpack.c.l.b16 %v92
    %v666 = vunpack.c.h.b16 %v92
    %v667 = vunpack.c.l.b16 %v93
    %v668 = vunpack.c.h.b16 %v93
    %v669 = vunpack.c.l.b16 %v94
    %v670 = vunpack.c.h.b16 %v94
    %v671 = vunpack.c.l.b16 %v95
    %v672 = vunpack.c.h.b16 %v95
    %v673 = vunpack.c.l.b16 %v96
    %v674 = vunpack.c.h.b16 %v96
    %v675 = vunpack.c.l.b16 %v97
    %v676 = vunpack.c.h.b16 %v97
    %v677 = vunpack.c.l.b16 %v98
    %v678 = vunpack.c.h.b16 %v98
    %v679 = vunpack.c.l.b16 %v99
    %v680 = vunpack.c.h.b16 %v99
    %v681 = vunpack.c.l.b16 %v100
    %v682 = vunpack.c.h.b16 %v100
    %v683 = vunpack.c.l.b16 %v101
    %v684 = vunpack.c.h.b16 %v101
    %v685 = vunpack.c.l.b16 %v102
    %v686 = vunpack.c.h.b16 %v102
    %v687 = vunpack.c.l.b16 %v103
    %v688 = vunpack.c.h.b16 %v103
    %v689 = vunpack.c.l.b16 %v104
    %v690 = vunpack.c.h.b16 %v104
    %v691 = vunpack.c.l.b16 %v105
    %v692 = vunpack.c.h.b16 %v105
    %v693 = vunpack.c.l.b16 %v106
    %v694 = vunpack.c.h.b16 %v106
    %v695 = vunpack.c.l.b16 %v107
    %v696 = vunpack.c.h.b16 %v107
    %v697 = vunpack.c.l.b16 %v108
    %v698 = vunpack.c.h.b16 %v108
    %v699 = vunpack.c.l.b16 %v109
    %v700 = vunpack.c.h.b16 %v109
    %v701 = vunpack.c.l.b16 %v110
    %v702 = vunpack.c.h.b16 %v110
    %v703 = vunpack.c.l.b16 %v111
    %v704 = vunpack.c.h.b16 %v111
    %v705 = vunpack.c.l.b16 %v112
    %v706 = vunpack.c.h.b16 %v112
    %v707 = vunpack.c.l.b16 %v113
    %v708 = vunpack.c.h.b16 %v113
    %v709 = vunpack.c.l.b16 %v114
    %v710 = vunpack.c.h.b16 %v114
    %v711 = vunpack.c.l.b16 %v115
    %v712 = vunpack.c.h.b16 %v115
    %v713 = vunpack.c.l.b16 %v116
    %v714 = vunpack.c.h.b16 %v116
    %v715 = vunpack.c.l.b16 %v117
    %v716 = vunpack.c.h.b16 %v117
    %v717 = vunpack.c.l.b16 %v118
    %v718 = vunpack.c.h.b16 %v118
    %v719 = vunpack.c.l.b16 %v119
    %v720 = vunpack.c.h.b16 %v119
    %v721 = vunpack.c.l.b16 %v120
    %v722 = vunpack.c.h.b16 %v120
    %v723 = vunpack.c.l.b16 %v121
    %v724 = vunpack.c.h.b16 %v121
    %v725 = vunpack.c.l.b16 %v122
    %v726 = vunpack.c.h.b16 %v122
    %v727 = vunpack.c.l.b16 %v123
    %v728 = vunpack.c.h.b16 %v123
    %v729 = vunpack.c.l.b16 %v124
    %v730 = vunpack.c.h.b16 %v124
    %v731 = vunpack.c.l.b16 %v125
    %v732 = vunpack.c.h.b16 %v125
    %v733 = vunpack.c.l.b16 %v126
    %v734 = vunpack.c.h.b16 %v126
    %v735 = vunpack.c.l.b16 %v127
    %v736 = vunpack.c.h.b16 %v127
    %v737 = vunpack.c.l.b16 %v128
    %v738 = vunpack.c.h.b16 %v128
    %v739 = vunpack.c.l.b16 %v129
    %v740 = vunpack.c.h.b16 %v129
    %v741 = vunpack.c.l.b16 %v130
    %v742 = vunpack.c.h.b16 %v130
    %v743 = vunpack.c.l.b16 %v131
    %v744 = vunpack.c.h.b16 %v131
    %v745 = vunpack.c.l.b16 %v132
    %v746 = vunpack.c.h.b16 %v132
    %v747 = vunpack.c.l.b16 %v133
    %v748 = vunpack.c.h.b16 %v133
    %v749 = vunpack.c.l.b16 %v134
    %v750 = vunpack.c.h.b16 %v134
    %v751 = vunpack.c.l.b16 %v135
    %v752 = vunpack.c.h.b16 %v135
    %v753 = vunpack.c.l.b16 %v136
    %v754 = vunpack.c.h.b16 %v136
    %v755 = vunpack.c.l.b16 %v137
    %v756 = vunpack.c.h.b16 %v137
    %v757 = vunpack.c.l.b16 %v138
    %v758 = vunpack.c.h.b16 %v138
    %v759 = vunpack.c.l.b16 %v139
    %v760 = vunpack.c.h.b16 %v139
    %v761 = vunpack.c.l.b16 %v140
    %v762 = vunpack.c.h.b16 %v140
    %v763 = vunpack.c.l.b16 %v141
    %v764 = vunpack.c.h.b16 %v141
    %v765 = vunpack.c.l.b16 %v142
    %v766 = vunpack.c.h.b16 %v142
    %v767 = vunpack.c.l.b16 %v143
    %v768 = vunpack.c.h.b16 %v143
    %v769 = vunpack.c.l.b16 %v144
    %v770 = vunpack.c.h.b16 %v144
    %v771 = vunpack.c.l.b16 %v145
    %v772 = vunpack.c.h.b16 %v145
    %v773 = vunpack.c.l.b16 %v146
    %v774 = vunpack.c.h.b16 %v146
    %v775 = vunpack.c.l.b16 %v147
    %v776 = vunpack.c.h.b16 %v147
    %v777 = vunpack.c.l.b16 %v148
    %v778 = vunpack.c.h.b16 %v148
    %v779 = vunpack.c.l.b16 %v149
    %v780 = vunpack.c.h.b16 %v149
    %v781 = vunpack.c.l.b16 %v150
    %v782 = vunpack.c.h.b16 %v150
    %v783 = vunpack.c.l.b16 %v151
    %v784 = vunpack.c.h.b16 %v151
    %v785 = vunpack.c.l.b16 %v152
    %v786 = vunpack.c.h.b16 %v152
    %v787 = vunpack.c.l.b16 %v153
    %v788 = vunpack.c.h.b16 %v153
    %v789 = vunpack.c.l.b16 %v154
    %v790 = vunpack.c.h.b16 %v154
    %v791 = vunpack.c.l.b16 %v155
    %v792 = vunpack.c.h.b16 %v155
    %v793 = vunpack.c.l.b16 %v156
    %v794 = vunpack.c.h.b16 %v156
    %v795 = vunpack.c.l.b16 %v157
    %v796 = vunpack.c.h.b16 %v157
    %v797 = vunpack.c.l.b16 %v158
    %v798 = vunpack.c.h.b16 %v158
    %v799 = vunpack.c.l.b16 %v159
    %v800 = vunpack.c.h.b16 %v159
    %v801 = vunpack.c.l.b16 %v160
    %v802 = vunpack.c.h.b16 %v160
    %v803 = vunpack.c.l.b16 %v161
    %v804 = vunpack.c.h.b16 %v161
    %v805 = vunpack.c.l.b16 %v162
    %v806 = vunpack.c.h.b16 %v162
    %v807 = vunpack.c.l.b16 %v163
    %v808 = vunpack.c.h.b16 %v163
    %v809 = vunpack.c.l.b16 %v164
    %v810 = vunpack.c.h.b16 %v164
    %v811 = vunpack.c.l.b16 %v165
    %v812 = vunpack.c.h.b16 %v165
    %v813 = vunpack.c.l.b16 %v166
    %v814 = vunpack.c.h.b16 %v166
    %v815 = vunpack.c.l.b16 %v167
    %v816 = vunpack.c.h.b16 %v167
    %v817 = vunpack.c.l.b16 %v168
    %v818 = vunpack.c.h.b16 %v168
    %v819 = vunpack.c.l.b16 %v169
    %v820 = vunpack.c.h.b16 %v169
    %v821 = vunpack.c.l.b16 %v170
    %v822 = vunpack.c.h.b16 %v170
    %v823 = vunpack.c.l.b16 %v171
    %v824 = vunpack.c.h.b16 %v171
    %v825 = vunpack.c.l.b16 %v172
    %v826 = vunpack.c.h.b16 %v172
    %v827 = vunpack.c.l.b16 %v173
    %v828 = vunpack.c.h.b16 %v173
    %v829 = vunpack.c.l.b16 %v174
    %v830 = vunpack.c.h.b16 %v174
    %v831 = vunpack.c.l.b16 %v175
    %v832 = vunpack.c.h.b16 %v175
    %v833 = vunpack.c.l.b16 %v176
    %v834 = vunpack.c.h.b16 %v176
    %v835 = vunpack.c.l.b16 %v177
    %v836 = vunpack.c.h.b16 %v177
    %v837 = vunpack.c.l.b16 %v178
    %v838 = vunpack.c.h.b16 %v178
    %v839 = vunpack.c.l.b16 %v179
    %v840 = vunpack.c.h.b16 %v179
    %v841 = vunpack.c.l.b16 %v180
    %v842 = vunpack.c.h.b16 %v180
    %v843 = vunpack.c.l.b16 %v181
    %v844 = vunpack.c.h.b16 %v181
    %v845 = vunpack.c.l.b16 %v182
    %v846 = vunpack.c.h.b16 %v182
    %v847 = vunpack.c.l.b16 %v183
    %v848 = vunpack.c.h.b16 %v183
    %v849 = vunpack.c.l.b16 %v184
    %v850 = vunpack.c.h.b16 %v184
    %v851 = vunpack.c.l.b16 %v185
    %v852 = vunpack.c.h.b16 %v185
    %v853 = vunpack.c.l.b16 %v186
    %v854 = vunpack.c.h.b16 %v186
    %v855 = vunpack.c.l.b16 %v187
    %v856 = vunpack.c.h.b16 %v187
    %v857 = vunpack.c.l.b16 %v188
    %v858 = vunpack.c.h.b16 %v188
    %v859 = vunpack.c.l.b16 %v189
    %v860 = vunpack.c.h.b16 %v189
    %v861 = vunpack.c.l.b16 %v190
    %v862 = vunpack.c.h.b16 %v190
    %v863 = vunpack.c.l.b16 %v191
    %v864 = vunpack.c.h.b16 %v191
    %v865 = vunpack.c.l.b16 %v192
    %v866 = vunpack.c.h.b16 %v192
    %v867 = vunpack.c.l.b16 %v193
    %v868 = vunpack.c.h.b16 %v193
    %v869 = vunpack.c.l.b16 %v194
    %v870 = vunpack.c.h.b16 %v194
    %v871 = vunpack.c.l.b16 %v195
    %v872 = vunpack.c.h.b16 %v195
    %v873 = vunpack.c.l.b16 %v196
    %v874 = vunpack.c.h.b16 %v196
    %v875 = vunpack.c.l.b16 %v197
    %v876 = vunpack.c.h.b16 %v197
    %v877 = vunpack.c.l.b16 %v198
    %v878 = vunpack.c.h.b16 %v198
    %v879 = vunpack.c.l.b16 %v199
    %v880 = vunpack.c.h.b16 %v199
    %v881 = vunpack.c.l.b16 %v200
    %v882 = vunpack.c.h.b16 %v200
    %v883 = vunpack.c.l.b16 %v201
    %v884 = vunpack.c.h.b16 %v201
    %v885 = vunpack.c.l.b16 %v202
    %v886 = vunpack.c.h.b16 %v202
    %v887 = vunpack.c.l.b16 %v203
    %v888 = vunpack.c.h.b16 %v203
    %v889 = vunpack.c.l.b16 %v204
    %v890 = vunpack.c.h.b16 %v204
    %v891 = vunpack.c.l.b16 %v205
    %v892 = vunpack.c.h.b16 %v205
    %v893 = vunpack.c.l.b16 %v206
    %v894 = vunpack.c.h.b16 %v206
    %v895 = vunpack.c.l.b16 %v207
    %v896 = vunpack.c.h.b16 %v207
    %v897 = vunpack.c.l.b16 %v208
    %v898 = vunpack.c.h.b16 %v208
    %v899 = vunpack.c.l.b16 %v209
    %v900 = vunpack.c.h.b16 %v209
    %v901 = vunpack.c.l.b16 %v210
    %v902 = vunpack.c.h.b16 %v210
    %v903 = vunpack.c.l.b16 %v211
    %v904 = vunpack.c.h.b16 %v211
    %v905 = vunpack.c.l.b16 %v212
    %v906 = vunpack.c.h.b16 %v212
    %v907 = vunpack.c.l.b16 %v213
    %v908 = vunpack.c.h.b16 %v213
    %v909 = vunpack.c.l.b16 %v214
    %v910 = vunpack.c.h.b16 %v214
    %v911 = vunpack.c.l.b16 %v215
    %v912 = vunpack.c.h.b16 %v215
    %v913 = vunpack.c.l.b16 %v216
    %v914 = vunpack.c.h.b16 %v216
    %v915 = vunpack.c.l.b16 %v217
    %v916 = vunpack.c.h.b16 %v217
    %v917 = vunpack.c.l.b16 %v218
    %v918 = vunpack.c.h.b16 %v218
    %v919 = vunpack.c.l.b16 %v219
    %v920 = vunpack.c.h.b16 %v219
    %v921 = vunpack.c.l.b16 %v220
    %v922 = vunpack.c.h.b16 %v220
    %v923 = vunpack.c.l.b16 %v221
    %v924 = vunpack.c.h.b16 %v221
    %v925 = vunpack.c.l.b16 %v222
    %v926 = vunpack.c.h.b16 %v222
    %v927 = vunpack.c.l.b16 %v223
    %v928 = vunpack.c.h.b16 %v223
    %v929 = vunpack.c.l.b16 %v224
    %v930 = vunpack.c.h.b16 %v224
    %v931 = vunpack.c.l.b16 %v225
    %v932 = vunpack.c.h.b16 %v225
    %v933 = vunpack.c.l.b16 %v226
    %v934 = vunpack.c.h.b16 %v226
    %v935 = vunpack.c.l.b16 %v227
    %v936 = vunpack.c.h.b16 %v227
    %v937 = vunpack.c.l.b16 %v228
    %v938 = vunpack.c.h.b16 %v228
    %v939 = vunpack.c.l.b16 %v229
    %v940 = vunpack.c.h.b16 %v229
    %v941 = vunpack.c.l.b16 %v230
    %v942 = vunpack.c.h.b16 %v230
    %v943 = vunpack.c.l.b16 %v231
    %v944 = vunpack.c.h.b16 %v231
    %v945 = vunpack.c.l.b16 %v232
    %v946 = vunpack.c.h.b16 %v232
    %v947 = vunpack.c.l.b16 %v233
    %v948 = vunpack.c.h.b16 %v233
    %v949 = vunpack.c.l.b16 %v234
    %v950 = vunpack.c.h.b16 %v234
    %v951 = vunpack.c.l.b16 %v235
    %v952 = vunpack.c.h.b16 %v235
    %v953 = vunpack.c.l.b16 %v236
    %v954 = vunpack.c.h.b16 %v236
    %v955 = vunpack.c.l.b16 %v237
    %v956 = vunpack.c.h.b16 %v237
    %v957 = vunpack.c.l.b16 %v238
    %v958 = vunpack.c.h.b16 %v238
    %v959 = vunpack.c.l.b16 %v239
    %v960 = vunpack.c.h.b16 %v239
    %v961 = vunpack.c.l.b16 %v240
    %v962 = vunpack.c.h.b16 %v240
    %v963 = vunpack.c.l.b16 %v241
    %v964 = vunpack.c.h.b16 %v241
    %v965 = vunpack.c.l.b16 %v242
    %v966 = vunpack.c.h.b16 %v242
    %v967 = vunpack.c.l.b16 %v243
    %v968 = vunpack.c.h.b16 %v243
    %v969 = vunpack.c.l.b16 %v244
    %v970 = vunpack.c.h.b16 %v244
    %v971 = vunpack.c.l.b16 %v245
    %v972 = vunpack.c.h.b16 %v245
    %v973 = vunpack.c.l.b16 %v246
    %v974 = vunpack.c.h.b16 %v246
    %v975 = vunpack.c.l.b16 %v247
    %v976 = vunpack.c.h.b16 %v247
    %v977 = vunpack.c.l.b16 %v248
    %v978 = vunpack.c.h.b16 %v248
    %v979 = vunpack.c.l.b16 %v249
    %v980 = vunpack.c.h.b16 %v249
    %v981 = vunpack.c.l.b16 %v250
    %v982 = vunpack.c.h.b16 %v250
    %v983 = vunpack.c.l.b16 %v251
    %v984 = vunpack.c.h.b16 %v251
    %v985 = vunpack.c.l.b16 %v252
    %v986 = vunpack.c.h.b16 %v252
    %v987 = vunpack.c.l.b16 %v253
    %v988 = vunpack.c.h.b16 %v253
    %v989 = vunpack.c.l.b16 %v254
    %v990 = vunpack.c.h.b16 %v254
    %v991 = vunpack.c.l.b16 %v255
    %v992 = vunpack.c.h.b16 %v255
    %v993 = vunpack.c.l.b16 %v256
    %v994 = vunpack.c.h.b16 %v256
    %v995 = vunpack.c.l.b16 %v257
    %v996 = vunpack.c.h.b16 %v257
    %v997 = vunpack.c.l.b16 %v258
    %v998 = vunpack.c.h.b16 %v258
    %v999 = vunpack.c.l.b16 %v259
    %v1000 = vunpack.c.h.b16 %v259
    %v1001 = vunpack.c.l.b16 %v260
    %v1002 = vunpack.c.h.b16 %v260
    %v1003 = vunpack.c.l.b16 %v261
    %v1004 = vunpack.c.h.b16 %v261
    %v1005 = vunpack.c.l.b16 %v262
    %v1006 = vunpack.c.h.b16 %v262
    %v1007 = vunpack.c.l.b16 %v263
    %v1008 = vunpack.c.h.b16 %v263
    %v1009 = vunpack.c.l.b16 %v264
    %v1010 = vunpack.c.h.b16 %v264
    %v1011 = vunpack.c.l.b16 %v265
    %v1012 = vunpack.c.h.b16 %v265
    %v1013 = vunpack.c.l.b16 %v266
    %v1014 = vunpack.c.h.b16 %v266
    %v1015 = vunpack.c.l.b16 %v267
    %v1016 = vunpack.c.h.b16 %v267
    %v1017 = vunpack.c.l.b16 %v268
    %v1018 = vunpack.c.h.b16 %v268
    %v1019 = vunpack.c.l.b16 %v269
    %v1020 = vunpack.c.h.b16 %v269
    %v1021 = vunpack.c.l.b16 %v270
    %v1022 = vunpack.c.h.b16 %v270
    %v1023 = vunpack.c.l.b16 %v271
    %v1024 = vunpack.c.h.b16 %v271
    %v1025 = vunpack.c.l.b16 %v272
    %v1026 = vunpack.c.h.b16 %v272
    %v1027 = vunpack.c.l.b16 %v273
    %v1028 = vunpack.c.h.b16 %v273
    %v1029 = vunpack.c.l.b16 %v274
    %v1030 = vunpack.c.h.b16 %v274
    %v1031 = vunpack.c.l.b16 %v275
    %v1032 = vunpack.c.h.b16 %v275
    %v1033 = vunpack.c.l.b16 %v276
    %v1034 = vunpack.c.h.b16 %v276
    %v1035 = vunpack.c.l.b16 %v277
    %v1036 = vunpack.c.h.b16 %v277
    %v1037 = vunpack.c.l.b16 %v278
    %v1038 = vunpack.c.h.b16 %v278
    %v1039 = vunpack.c.l.b16 %v279
    %v1040 = vunpack.c.h.b16 %v279
    %v1041 = vunpack.c.l.b16 %v280
    %v1042 = vunpack.c.h.b16 %v280
    %v1043 = vunpack.c.l.b16 %v281
    %v1044 = vunpack.c.h.b16 %v281
    %v1045 = vunpack.c.l.b16 %v282
    %v1046 = vunpack.c.h.b16 %v282
    %v1047 = vunpack.c.l.b16 %v283
    %v1048 = vunpack.c.h.b16 %v283
    %v1049 = vunpack.c.l.b16 %v284
    %v1050 = vunpack.c.h.b16 %v284
    %v1051 = vunpack.c.l.b16 %v285
    %v1052 = vunpack.c.h.b16 %v285
    %v1053 = vunpack.c.l.b16 %v286
    %v1054 = vunpack.c.h.b16 %v286
    %v1055 = vunpack.c.l.b16 %v287
    %v1056 = vunpack.c.h.b16 %v287
    %v1057 = vunpack.c.l.b16 %v288
    %v1058 = vunpack.c.h.b16 %v288
    %v1059 = vunpack.c.l.b16 %v289
    %v1060 = vunpack.c.h.b16 %v289
    %v1061 = vunpack.c.l.b16 %v290
    %v1062 = vunpack.c.h.b16 %v290
    %v1063 = vunpack.c.l.b16 %v291
    %v1064 = vunpack.c.h.b16 %v291
    %v1065 = vunpack.c.l.b16 %v292
    %v1066 = vunpack.c.h.b16 %v292
    %v1067 = vunpack.c.l.b16 %v293
    %v1068 = vunpack.c.h.b16 %v293
    %v1069 = vunpack.c.l.b16 %v294
    %v1070 = vunpack.c.h.b16 %v294
    %v1071 = vunpack.c.l.b16 %v295
    %v1072 = vunpack.c.h.b16 %v295
    %v1073 = vunpack.c.l.b16 %v296
    %v1074 = vunpack.c.h.b16 %v296
    %v1075 = vunpack.c.l.b16 %v297
    %v1076 = vunpack.c.h.b16 %v297
    %v1077 = vunpack.c.l.b16 %v298
    %v1078 = vunpack.c.h.b16 %v298
    %v1079 = vunpack.c.l.b16 %v299
    %v1080 = vunpack.c.h.b16 %v299
    %v1081 = vunpack.c.l.b16 %v300
    %v1082 = vunpack.c.h.b16 %v300
    %v1083 = vunpack.c.l.b16 %v301
    %v1084 = vunpack.c.h.b16 %v301
    %v1085 = vunpack.c.l.b16 %v302
    %v1086 = vunpack.c.h.b16 %v302
    %v1087 = vunpack.c.l.b16 %v303
    %v1088 = vunpack.c.h.b16 %v303
    %v1089 = vunpack.c.l.b16 %v304
    %v1090 = vunpack.c.h.b16 %v304
    %v1091 = vunpack.c.l.b16 %v305
    %v1092 = vunpack.c.h.b16 %v305
    %v1093 = vunpack.c.l.b16 %v306
    %v1094 = vunpack.c.h.b16 %v306
    %v1095 = vunpack.c.l.b16 %v307
    %v1096 = vunpack.c.h.b16 %v307
    %v1097 = vunpack.c.l.b16 %v308
    %v1098 = vunpack.c.h.b16 %v308
    %v1099 = vunpack.c.l.b16 %v309
    %v1100 = vunpack.c.h.b16 %v309
    %v1101 = vunpack.c.l.b16 %v310
    %v1102 = vunpack.c.h.b16 %v310
    %v1103 = vunpack.c.l.b16 %v311
    %v1104 = vunpack.c.h.b16 %v311
    %v1105 = vunpack.c.l.b16 %v312
    %v1106 = vunpack.c.h.b16 %v312
    %v1107 = vunpack.c.l.b16 %v313
    %v1108 = vunpack.c.h.b16 %v313
    %v1109 = vunpack.c.l.b16 %v314
    %v1110 = vunpack.c.h.b16 %v314
    %v1111 = vpack.c.b16 %v603, %v599
    %v1112 = vpack.c.b16 %v604, %v600
    %v1113 = vpack.c.b16 %v605, %v601
    %v1114 = vpack.c.b16 %v606, %v602
    %v1115 = vpack.c.b16 %v611, %v607
    %v1116 = vpack.c.b16 %v612, %v608
    %v1117 = vpack.c.b16 %v613, %v609
    %v1118 = vpack.c.b16 %v614, %v610
    %v1119 = vpack.c.b16 %v619, %v615
    %v1120 = vpack.c.b16 %v620, %v616
    %v1121 = vpack.c.b16 %v621, %v617
    %v1122 = vpack.c.b16 %v622, %v618
    %v1123 = vpack.c.b16 %v627, %v623
    %v1124 = vpack.c.b16 %v628, %v624
    %v1125 = vpack.c.b16 %v629, %v625
    %v1126 = vpack.c.b16 %v630, %v626
    %v1127 = vpack.c.b16 %v635, %v631
    %v1128 = vpack.c.b16 %v636, %v632
    %v1129 = vpack.c.b16 %v637, %v633
    %v1130 = vpack.c.b16 %v638, %v634
    %v1131 = vpack.c.b16 %v643, %v639
    %v1132 = vpack.c.b16 %v644, %v640
    %v1133 = vpack.c.b16 %v645, %v641
    %v1134 = vpack.c.b16 %v646, %v642
    %v1135 = vpack.c.b16 %v651, %v647
    %v1136 = vpack.c.b16 %v652, %v648
    %v1137 = vpack.c.b16 %v653, %v649
    %v1138 = vpack.c.b16 %v654, %v650
    %v1139 = vpack.c.b16 %v659, %v655
    %v1140 = vpack.c.b16 %v660, %v656
    %v1141 = vpack.c.b16 %v661, %v657
    %v1142 = vpack.c.b16 %v662, %v658
    %v1143 = vpack.c.b16 %v667, %v663
    %v1144 = vpack.c.b16 %v668, %v664
    %v1145 = vpack.c.b16 %v669, %v665
    %v1146 = vpack.c.b16 %v670, %v666
    %v1147 = vpack.c.b16 %v675, %v671
    %v1148 = vpack.c.b16 %v676, %v672
    %v1149 = vpack.c.b16 %v677, %v673
    %v1150 = vpack.c.b16 %v678, %v674
    %v1151 = vpack.c.b16 %v683, %v679
    %v1152 = vpack.c.b16 %v684, %v680
    %v1153 = vpack.c.b16 %v685, %v681
    %v1154 = vpack.c.b16 %v686, %v682
    %v1155 = vpack.c.b16 %v691, %v687
    %v1156 = vpack.c.b16 %v692, %v688
    %v1157 = vpack.c.b16 %v693, %v689
    %v1158 = vpack.c.b16 %v694, %v690
    %v1159 = vpack.c.b16 %v699, %v695
    %v1160 = vpack.c.b16 %v700, %v696
    %v1161 = vpack.c.b16 %v701, %v697
    %v1162 = vpack.c.b16 %v702, %v698
    %v1163 = vpack.c.b16 %v707, %v703
    %v1164 = vpack.c.b16 %v708, %v704
    %v1165 = vpack.c.b16 %v709, %v705
    %v1166 = vpack.c.b16 %v710, %v706
    %v1167 = vpack.c.b16 %v715, %v711
    %v1168 = vpack.c.b16 %v716, %v712
    %v1169 = vpack.c.b16 %v717, %v713
    %v1170 = vpack.c.b16 %v718, %v714
    %v1171 = vpack.c.b16 %v723, %v719
    %v1172 = vpack.c.b16 %v724, %v720
    %v1173 = vpack.c.b16 %v725, %v721
    %v1174 = vpack.c.b16 %v726, %v722
    %v1175 = vpack.c.b16 %v731, %v727
    %v1176 = vpack.c.b16 %v732, %v728
    %v1177 = vpack.c.b16 %v733, %v729
    %v1178 = vpack.c.b16 %v734, %v730
    %v1179 = vpack.c.b16 %v739, %v735
    %v1180 = vpack.c.b16 %v740, %v736
    %v1181 = vpack.c.b16 %v741, %v737
    %v1182 = vpack.c.b16 %v742, %v738
    %v1183 = vpack.c.b16 %v747, %v743
    %v1184 = vpack.c.b16 %v748, %v744
    %v1185 = vpack.c.b16 %v749, %v745
    %v1186 = vpack.c.b16 %v750, %v746
    %v1187 = vpack.c.b16 %v755, %v751
    %v1188 = vpack.c.b16 %v756, %v752
    %v1189 = vpack.c.b16 %v757, %v753
    %v1190 = vpack.c.b16 %v758, %v754
    %v1191 = vpack.c.b16 %v763, %v759
    %v1192 = vpack.c.b16 %v764, %v760
    %v1193 = vpack.c.b16 %v765, %v761
    %v1194 = vpack.c.b16 %v766, %v762
    %v1195 = vpack.c.b16 %v771, %v767
    %v1196 = vpack.c.b16 %v772, %v768
    %v1197 = vpack.c.b16 %v773, %v769
    %v1198 = vpack.c.b16 %v774, %v770
    %v1199 = vpack.c.b16 %v779, %v775
    %v1200 = vpack.c.b16 %v780, %v776
    %v1201 = vpack.c.b16 %v781, %v777
    %v1202 = vpack.c.b16 %v782, %v778
    %v1203 = vpack.c.b16 %v787, %v783
    %v1204 = vpack.c.b16 %v788, %v784
    %v1205 = vpack.c.b16 %v789, %v785
    %v1206 = vpack.c.b16 %v790, %v786
    %v1207 = vpack.c.b16 %v795, %v791
    %v1208 = vpack.c.b16 %v796, %v792
    %v1209 = vpack.c.b16 %v797, %v793
    %v1210 = vpack.c.b16 %v798, %v794
    %v1211 = vpack.c.b16 %v803, %v799
    %v1212 = vpack.c.b16 %v804, %v800
    %v1213 = vpack.c.b16 %v805, %v801
    %v1214 = vpack.c.b16 %v806, %v802
    %v1215 = vpack.c.b16 %v811, %v807
    %v1216 = vpack.c.b16 %v812, %v808
    %v1217 = vpack.c.b16 %v813, %v809
    %v1218 = vpack.c.b16 %v814, %v810
    %v1219 = vpack.c.b16 %v819, %v815
    %v1220 = vpack.c.b16 %v820, %v816
    %v1221 = vpack.c.b16 %v821, %v817
    %v1222 = vpack.c.b16 %v822, %v818
    %v1223 = vpack.c.b16 %v827, %v823
    %v1224 = vpack.c.b16 %v828, %v824
    %v1225 = vpack.c.b16 %v829, %v825
    %v1226 = vpack.c.b16 %v830, %v826
    %v1227 = vpack.c.b16 %v835, %v831
    %v1228 = vpack.c.b16 %v836, %v832
    %v1229 = vpack.c.b16 %v837, %v833
    %v1230 = vpack.c.b16 %v838, %v834
    %v1231 = vpack.c.b16 %v843, %v839
    %v1232 = vpack.c.b16 %v844, %v840
    %v1233 = vpack.c.b16 %v845, %v841
    %v1234 = vpack.c.b16 %v846, %v842
    %v1235 = vpack.c.b16 %v851, %v847
    %v1236 = vpack.c.b16 %v852, %v848
    %v1237 = vpack.c.b16 %v853, %v849
    %v1238 = vpack.c.b16 %v854, %v850
    %v1239 = vpack.c.b16 %v859, %v855
    %v1240 = vpack.c.b16 %v860, %v856
    %v1241 = vpack.c.b16 %v861, %v857
    %v1242 = vpack.c.b16 %v862, %v858
    %v1243 = vpack.c.b16 %v867, %v863
    %v1244 = vpack.c.b16 %v868, %v864
    %v1245 = vpack.c.b16 %v869, %v865
    %v1246 = vpack.c.b16 %v870, %v866
    %v1247 = vpack.c.b16 %v875, %v871
    %v1248 = vpack.c.b16 %v876, %v872
    %v1249 = vpack.c.b16 %v877, %v873
    %v1250 = vpack.c.b16 %v878, %v874
    %v1251 = vpack.c.b16 %v883, %v879
    %v1252 = vpack.c.b16 %v884, %v880
    %v1253 = vpack.c.b16 %v885, %v881
    %v1254 = vpack.c.b16 %v886, %v882
    %v1255 = vpack.c.b16 %v891, %v887
    %v1256 = vpack.c.b16 %v892, %v888
    %v1257 = vpack.c.b16 %v893, %v889
    %v1258 = vpack.c.b16 %v894, %v890
    %v1259 = vpack.c.b16 %v899, %v895
    %v1260 = vpack.c.b16 %v900, %v896
    %v1261 = vpack.c.b16 %v901, %v897
    %v1262 = vpack.c.b16 %v902, %v898
    %v1263 = vpack.c.b16 %v907, %v903
    %v1264 = vpack.c.b16 %v908, %v904
    %v1265 = vpack.c.b16 %v909, %v905
    %v1266 = vpack.c.b16 %v910, %v906
    %v1267 = vpack.c.b16 %v915, %v911
    %v1268 = vpack.c.b16 %v916, %v912
    %v1269 = vpack.c.b16 %v917, %v913
    %v1270 = vpack.c.b16 %v918, %v914
    %v1271 = vpack.c.b16 %v923, %v919
    %v1272 = vpack.c.b16 %v924, %v920
    %v1273 = vpack.c.b16 %v925, %v921
    %v1274 = vpack.c.b16 %v926, %v922
    %v1275 = vpack.c.b16 %v931, %v927
    %v1276 = vpack.c.b16 %v932, %v928
    %v1277 = vpack.c.b16 %v933, %v929
    %v1278 = vpack.c.b16 %v934, %v930
    %v1279 = vpack.c.b16 %v939, %v935
    %v1280 = vpack.c.b16 %v940, %v936
    %v1281 = vpack.c.b16 %v941, %v937
    %v1282 = vpack.c.b16 %v942, %v938
    %v1283 = vpack.c.b16 %v947, %v943
    %v1284 = vpack.c.b16 %v948, %v944
    %v1285 = vpack.c.b16 %v949, %v945
    %v1286 = vpack.c.b16 %v950, %v946
    %v1287 = vpack.c.b16 %v955, %v951
    %v1288 = vpack.c.b16 %v956, %v952
    %v1289 = vpack.c.b16 %v957, %v953
    %v1290 = vpack.c.b16 %v958, %v954
    %v1291 = vpack.c.b16 %v963, %v959
    %v1292 = vpack.c.b16 %v964, %v960
    %v1293 = vpack.c.b16 %v965, %v961
    %v1294 = vpack.c.b16 %v966, %v962
    %v1295 = vpack.c.b16 %v971, %v967
    %v1296 = vpack.c.b16 %v972, %v968
    %v1297 = vpack.c.b16 %v973, %v969
    %v1298 = vpack.c.b16 %v974, %v970
    %v1299 = vpack.c.b16 %v979, %v975
    %v1300 = vpack.c.b16 %v980, %v976
    %v1301 = vpack.c.b16 %v981, %v977
    %v1302 = vpack.c.b16 %v982, %v978
    %v1303 = vpack.c.b16 %v987, %v983
    %v1304 = vpack.c.b16 %v988, %v984
    %v1305 = vpack.c.b16 %v989, %v985
    %v1306 = vpack.c.b16 %v990, %v986
    %v1307 = vpack.c.b16 %v995, %v991
    %v1308 = vpack.c.b16 %v996, %v992
    %v1309 = vpack.c.b16 %v997, %v993
    %v1310 = vpack.c.b16 %v998, %v994
    %v1311 = vpack.c.b16 %v1003, %v999
    %v1312 = vpack.c.b16 %v1004, %v1000
    %v1313 = vpack.c.b16 %v1005, %v1001
    %v1314 = vpack.c.b16 %v1006, %v1002
    %v1315 = vpack.c.b16 %v1011, %v1007
    %v1316 = vpack.c.b16 %v1012, %v1008
    %v1317 = vpack.c.b16 %v1013, %v1009
    %v1318 = vpack.c.b16 %v1014, %v1010
    %v1319 = vpack.c.b16 %v1019, %v1015
    %v1320 = vpack.c.b16 %v1020, %v1016
    %v1321 = vpack.c.b16 %v1021, %v1017
    %v1322 = vpack.c.b16 %v1022, %v1018
    %v1323 = vpack.c.b16 %v1027, %v1023
    %v1324 = vpack.c.b16 %v1028, %v1024
    %v1325 = vpack.c.b16 %v1029, %v1025
    %v1326 = vpack.c.b16 %v1030, %v1026
    %v1327 = vpack.c.b16 %v1035, %v1031
    %v1328 = vpack.c.b16 %v1036, %v1032
    %v1329 = vpack.c.b16 %v1037, %v1033
    %v1330 = vpack.c.b16 %v1038, %v1034
    %v1331 = vpack.c.b16 %v1043, %v1039
    %v1332 = vpack.c.b16 %v1044, %v1040
    %v1333 = vpack.c.b16 %v1045, %v1041
    %v1334 = vpack.c.b16 %v1046, %v1042
    %v1335 = vpack.c.b16 %v1051, %v1047
    %v1336 = vpack.c.b16 %v1052, %v1048
    %v1337 = vpack.c.b16 %v1053, %v1049
    %v1338 = vpack.c.b16 %v1054, %v1050
    %v1339 = vpack.c.b16 %v1059, %v1055
    %v1340 = vpack.c.b16 %v1060, %v1056
    %v1341 = vpack.c.b16 %v1061, %v1057
    %v1342 = vpack.c.b16 %v1062, %v1058
    %v1343 = vpack.c.b16 %v1067, %v1063
    %v1344 = vpack.c.b16 %v1068, %v1064
    %v1345 = vpack.c.b16 %v1069, %v1065
    %v1346 = vpack.c.b16 %v1070, %v1066
    %v1347 = vpack.c.b16 %v1075, %v1071
    %v1348 = vpack.c.b16 %v1076, %v1072
    %v1349 = vpack.c.b16 %v1077, %v1073
    %v1350 = vpack.c.b16 %v1078, %v1074
    %v1351 = vpack.c.b16 %v1083, %v1079
    %v1352 = vpack.c.b16 %v1084, %v1080
    %v1353 = vpack.c.b16 %v1085, %v1081
    %v1354 = vpack.c.b16 %v1086, %v1082
    %v1355 = vpack.c.b16 %v1091, %v1087
    %v1356 = vpack.c.b16 %v1092, %v1088
    %v1357 = vpack.c.b16 %v1093, %v1089
    %v1358 = vpack.c.b16 %v1094, %v1090
    %v1359 = vpack.c.b16 %v1099, %v1095
    %v1360 = vpack.c.b16 %v1100, %v1096
    %v1361 = vpack.c.b16 %v1101, %v1097
    %v1362 = vpack.c.b16 %v1102, %v1098
    %v1363 = vpack.c.b16 %v1107, %v1103
    %v1364 = vpack.c.b16 %v1108, %v1104
    %v1365 = vpack.c.b16 %v1109, %v1105
    %v1366 = vpack.c.b16 %v1110, %v1106
    %1623 = vmatprep.subr.bf16.mxu0 %v1140
    %1624 = vmatpush1.bf16.msra.mxu0 %v1139
    %1625 = vmatprep.subr.bf16.mxu0 %v1136
    %1626 = vmatpush1.bf16.msra.mxu0 %v1135
    %1627 = vmatprep.subr.bf16.mxu0 %v1132
    %1628 = vmatpush1.bf16.msra.mxu0 %v1131
    %1629 = vmatprep.subr.bf16.mxu0 %v1128
    %1630 = vmatpush1.bf16.msra.mxu0 %v1127
    %1631 = vmatprep.subr.bf16.mxu0 %v1124
    %1632 = vmatpush1.bf16.msra.mxu0 %v1123
    %1633 = vmatprep.subr.bf16.mxu0 %v1120
    %1634 = vmatpush1.bf16.msra.mxu0 %v1119
    %1635 = vmatprep.subr.bf16.mxu0 %v1116
    %1636 = vmatpush1.bf16.msra.mxu0 %v1115
    %1637 = vmatprep.subr.bf16.mxu0 %v1112
    %1638 = vmatpush1.bf16.msra.mxu0 %v1111
    %1639 = vmatprep.subr.bf16.mxu0 %v1172
    %1640 = vmatpush2.bf16.msra.mxu0 %v1171
    %1641 = vmatprep.subr.bf16.mxu0 %v1168
    %1642 = vmatpush2.bf16.msra.mxu0 %v1167
    %1643 = vmatprep.subr.bf16.mxu0 %v1164
    %1644 = vmatpush2.bf16.msra.mxu0 %v1163
    %1645 = vmatprep.subr.bf16.mxu0 %v1160
    %1646 = vmatpush2.bf16.msra.mxu0 %v1159
    %1647 = vmatprep.subr.bf16.mxu0 %v1156
    %1648 = vmatpush2.bf16.msra.mxu0 %v1155
    %1649 = vmatprep.subr.bf16.mxu0 %v1152
    %1650 = vmatpush2.bf16.msra.mxu0 %v1151
    %1651 = vmatprep.subr.bf16.mxu0 %v1148
    %1652 = vmatpush2.bf16.msra.mxu0 %v1147
    %1653 = vmatprep.subr.bf16.mxu0 %v1144
    %1654 = vmatpush2.bf16.msra.mxu0 %v1143
    %1655 = vmatprep.mubr.bf16.mxu0 %v328
    %1656 = vmatmul.mubr.bf16.gmra.mxu0 %v327
    %v1657 = vpop.f32.mrf.mxu0
    %v1658 = vadd.f32 0.0, %v1657
    %v1659 = vpop.f32.mrf.mxu0
    %v1660 = vadd.f32 0.0, %v1659
    %v1661 = vpop.f32.mrf.mxu0
    %v1662 = vpop.f32.mrf.mxu0
    %1663 = vdwg.mxu0
    %1664 = vmatprep.subr.bf16.mxu0 %v1204
    %1665 = vmatpush1.bf16.msra.mxu0 %v1203
    %1666 = vmatprep.subr.bf16.mxu0 %v1200
    %1667 = vmatpush1.bf16.msra.mxu0 %v1199
    %1668 = vmatprep.subr.bf16.mxu0 %v1196
    %1669 = vmatpush1.bf16.msra.mxu0 %v1195
    %1670 = vmatprep.subr.bf16.mxu0 %v1192
    %1671 = vmatpush1.bf16.msra.mxu0 %v1191
    %1672 = vmatprep.subr.bf16.mxu0 %v1188
    %1673 = vmatpush1.bf16.msra.mxu0 %v1187
    %1674 = vmatprep.subr.bf16.mxu0 %v1184
    %1675 = vmatpush1.bf16.msra.mxu0 %v1183
    %1676 = vmatprep.subr.bf16.mxu0 %v1180
    %1677 = vmatpush1.bf16.msra.mxu0 %v1179
    %1678 = vmatprep.subr.bf16.mxu0 %v1176
    %1679 = vmatpush1.bf16.msra.mxu0 %v1175
    %1680 = vmatprep.subr.bf16.mxu0 %v1236
    %1681 = vmatpush2.bf16.msra.mxu0 %v1235
    %1682 = vmatprep.subr.bf16.mxu0 %v1232
    %1683 = vmatpush2.bf16.msra.mxu0 %v1231
    %1684 = vmatprep.subr.bf16.mxu0 %v1228
    %1685 = vmatpush2.bf16.msra.mxu0 %v1227
    %1686 = vmatprep.subr.bf16.mxu0 %v1224
    %1687 = vmatpush2.bf16.msra.mxu0 %v1223
    %1688 = vmatprep.subr.bf16.mxu0 %v1220
    %1689 = vmatpush2.bf16.msra.mxu0 %v1219
    %1690 = vmatprep.subr.bf16.mxu0 %v1216
    %1691 = vmatpush2.bf16.msra.mxu0 %v1215
    %1692 = vmatprep.subr.bf16.mxu0 %v1212
    %1693 = vmatpush2.bf16.msra.mxu0 %v1211
    %1694 = vmatprep.subr.bf16.mxu0 %v1208
    %1695 = vmatpush2.bf16.msra.mxu0 %v1207
    %1696 = vmatprep.mubr.bf16.mxu0 %v330
    %1697 = vmatmul.mubr.bf16.gmra.mxu0 %v329
    %v1698 = vpop.f32.mrf.mxu0
    %v1699 = vadd.f32 %v1658, %v1698
    %v1700 = vpop.f32.mrf.mxu0
    %v1701 = vadd.f32 %v1660, %v1700
    %v1702 = vpop.f32.mrf.mxu0
    %v1703 = vpop.f32.mrf.mxu0
    %1704 = vdwg.mxu0
    %1705 = vmatprep.subr.bf16.mxu0 %v1268
    %1706 = vmatpush1.bf16.msra.mxu0 %v1267
    %1707 = vmatprep.subr.bf16.mxu0 %v1264
    %1708 = vmatpush1.bf16.msra.mxu0 %v1263
    %1709 = vmatprep.subr.bf16.mxu0 %v1260
    %1710 = vmatpush1.bf16.msra.mxu0 %v1259
    %1711 = vmatprep.subr.bf16.mxu0 %v1256
    %1712 = vmatpush1.bf16.msra.mxu0 %v1255
    %1713 = vmatprep.subr.bf16.mxu0 %v1252
    %1714 = vmatpush1.bf16.msra.mxu0 %v1251
    %1715 = vmatprep.subr.bf16.mxu0 %v1248
    %1716 = vmatpush1.bf16.msra.mxu0 %v1247
    %1717 = vmatprep.subr.bf16.mxu0 %v1244
    %1718 = vmatpush1.bf16.msra.mxu0 %v1243
    %1719 = vmatprep.subr.bf16.mxu0 %v1240
    %1720 = vmatpush1.bf16.msra.mxu0 %v1239
    %1721 = vmatprep.subr.bf16.mxu0 %v1300
    %1722 = vmatpush2.bf16.msra.mxu0 %v1299
    %1723 = vmatprep.subr.bf16.mxu0 %v1296
    %1724 = vmatpush2.bf16.msra.mxu0 %v1295
    %1725 = vmatprep.subr.bf16.mxu0 %v1292
    %1726 = vmatpush2.bf16.msra.mxu0 %v1291
    %1727 = vmatprep.subr.bf16.mxu0 %v1288
    %1728 = vmatpush2.bf16.msra.mxu0 %v1287
    %1729 = vmatprep.subr.bf16.mxu0 %v1284
    %1730 = vmatpush2.bf16.msra.mxu0 %v1283
    %1731 = vmatprep.subr.bf16.mxu0 %v1280
    %1732 = vmatpush2.bf16.msra.mxu0 %v1279
    %1733 = vmatprep.subr.bf16.mxu0 %v1276
    %1734 = vmatpush2.bf16.msra.mxu0 %v1275
    %1735 = vmatprep.subr.bf16.mxu0 %v1272
    %1736 = vmatpush2.bf16.msra.mxu0 %v1271
    %1737 = vmatprep.mubr.bf16.mxu0 %v332
    %1738 = vmatmul.mubr.bf16.gmra.mxu0 %v331
    %v1739 = vpop.f32.mrf.mxu0
    %v1740 = vadd.f32 %v1699, %v1739
    %v1741 = vpop.f32.mrf.mxu0
    %v1742 = vadd.f32 %v1701, %v1741
    %v1743 = vpop.f32.mrf.mxu0
    %v1744 = vpop.f32.mrf.mxu0
    %1745 = vdwg.mxu0
    %1746 = vmatprep.subr.bf16.mxu0 %v1332
    %1747 = vmatpush1.bf16.msra.mxu0 %v1331
    %1748 = vmatprep.subr.bf16.mxu0 %v1328
    %1749 = vmatpush1.bf16.msra.mxu0 %v1327
    %1750 = vmatprep.subr.bf16.mxu0 %v1324
    %1751 = vmatpush1.bf16.msra.mxu0 %v1323
    %1752 = vmatprep.subr.bf16.mxu0 %v1320
    %1753 = vmatpush1.bf16.msra.mxu0 %v1319
    %1754 = vmatprep.subr.bf16.mxu0 %v1316
    %1755 = vmatpush1.bf16.msra.mxu0 %v1315
    %1756 = vmatprep.subr.bf16.mxu0 %v1312
    %1757 = vmatpush1.bf16.msra.mxu0 %v1311
    %1758 = vmatprep.subr.bf16.mxu0 %v1308
    %1759 = vmatpush1.bf16.msra.mxu0 %v1307
    %1760 = vmatprep.subr.bf16.mxu0 %v1304
    %1761 = vmatpush1.bf16.msra.mxu0 %v1303
    %1762 = vmatprep.subr.bf16.mxu0 %v1364
    %1763 = vmatpush2.bf16.msra.mxu0 %v1363
    %1764 = vmatprep.subr.bf16.mxu0 %v1360
    %1765 = vmatpush2.bf16.msra.mxu0 %v1359
    %1766 = vmatprep.subr.bf16.mxu0 %v1356
    %1767 = vmatpush2.bf16.msra.mxu0 %v1355
    %1768 = vmatprep.subr.bf16.mxu0 %v1352
    %1769 = vmatpush2.bf16.msra.mxu0 %v1351
    %1770 = vmatprep.subr.bf16.mxu0 %v1348
    %1771 = vmatpush2.bf16.msra.mxu0 %v1347
    %1772 = vmatprep.subr.bf16.mxu0 %v1344
    %1773 = vmatpush2.bf16.msra.mxu0 %v1343
    %1774 = vmatprep.subr.bf16.mxu0 %v1340
    %1775 = vmatpush2.bf16.msra.mxu0 %v1339
    %1776 = vmatprep.subr.bf16.mxu0 %v1336
    %1777 = vmatpush2.bf16.msra.mxu0 %v1335
    %1778 = vmatprep.mubr.bf16.mxu0 %v334
    %1779 = vmatmul.mubr.bf16.gmra.mxu0 %v333
    %v1780 = vpop.f32.mrf.mxu0
    %v1781 = vadd.f32 %v1740, %v1780
    %v1782 = vpop.f32.mrf.mxu0
    %v1783 = vadd.f32 %v1742, %v1782
    %v1784 = vpop.f32.mrf.mxu0
    %v1785 = vpop.f32.mrf.mxu0
    %1786 = vdwg.mxu0
    %1787 = vmatprep.subr.bf16.mxu0 %v1142
    %1788 = vmatpush1.bf16.msra.mxu0 %v1141
    %1789 = vmatprep.subr.bf16.mxu0 %v1138
    %1790 = vmatpush1.bf16.msra.mxu0 %v1137
    %1791 = vmatprep.subr.bf16.mxu0 %v1134
    %1792 = vmatpush1.bf16.msra.mxu0 %v1133
    %1793 = vmatprep.subr.bf16.mxu0 %v1130
    %1794 = vmatpush1.bf16.msra.mxu0 %v1129
    %1795 = vmatprep.subr.bf16.mxu0 %v1126
    %1796 = vmatpush1.bf16.msra.mxu0 %v1125
    %1797 = vmatprep.subr.bf16.mxu0 %v1122
    %1798 = vmatpush1.bf16.msra.mxu0 %v1121
    %1799 = vmatprep.subr.bf16.mxu0 %v1118
    %1800 = vmatpush1.bf16.msra.mxu0 %v1117
    %1801 = vmatprep.subr.bf16.mxu0 %v1114
    %1802 = vmatpush1.bf16.msra.mxu0 %v1113
    %1803 = vmatprep.subr.bf16.mxu0 %v1174
    %1804 = vmatpush2.bf16.msra.mxu0 %v1173
    %1805 = vmatprep.subr.bf16.mxu0 %v1170
    %1806 = vmatpush2.bf16.msra.mxu0 %v1169
    %1807 = vmatprep.subr.bf16.mxu0 %v1166
    %1808 = vmatpush2.bf16.msra.mxu0 %v1165
    %1809 = vmatprep.subr.bf16.mxu0 %v1162
    %1810 = vmatpush2.bf16.msra.mxu0 %v1161
    %1811 = vmatprep.subr.bf16.mxu0 %v1158
    %1812 = vmatpush2.bf16.msra.mxu0 %v1157
    %1813 = vmatprep.subr.bf16.mxu0 %v1154
    %1814 = vmatpush2.bf16.msra.mxu0 %v1153
    %1815 = vmatprep.subr.bf16.mxu0 %v1150
    %1816 = vmatpush2.bf16.msra.mxu0 %v1149
    %1817 = vmatprep.subr.bf16.mxu0 %v1146
    %1818 = vmatpush2.bf16.msra.mxu0 %v1145
    %1819 = vmatprep.mubr.bf16.mxu0 %v328
    %1820 = vmatmul.mubr.bf16.gmra.mxu0 %v327
    %v1821 = vpop.f32.mrf.mxu0
    %v1822 = vadd.f32 0.0, %v1821
    %v1823 = vpop.f32.mrf.mxu0
    %v1824 = vadd.f32 0.0, %v1823
    %v1825 = vpop.f32.mrf.mxu0
    %v1826 = vpop.f32.mrf.mxu0
    %1827 = vdwg.mxu0
    %1828 = vmatprep.subr.bf16.mxu0 %v1206
    %1829 = vmatpush1.bf16.msra.mxu0 %v1205
    %1830 = vmatprep.subr.bf16.mxu0 %v1202
    %1831 = vmatpush1.bf16.msra.mxu0 %v1201
    %1832 = vmatprep.subr.bf16.mxu0 %v1198
    %1833 = vmatpush1.bf16.msra.mxu0 %v1197
    %1834 = vmatprep.subr.bf16.mxu0 %v1194
    %1835 = vmatpush1.bf16.msra.mxu0 %v1193
    %1836 = vmatprep.subr.bf16.mxu0 %v1190
    %1837 = vmatpush1.bf16.msra.mxu0 %v1189
    %1838 = vmatprep.subr.bf16.mxu0 %v1186
    %1839 = vmatpush1.bf16.msra.mxu0 %v1185
    %1840 = vmatprep.subr.bf16.mxu0 %v1182
    %1841 = vmatpush1.bf16.msra.mxu0 %v1181
    %1842 = vmatprep.subr.bf16.mxu0 %v1178
    %1843 = vmatpush1.bf16.msra.mxu0 %v1177
    %1844 = vmatprep.subr.bf16.mxu0 %v1238
    %1845 = vmatpush2.bf16.msra.mxu0 %v1237
    %1846 = vmatprep.subr.bf16.mxu0 %v1234
    %1847 = vmatpush2.bf16.msra.mxu0 %v1233
    %1848 = vmatprep.subr.bf16.mxu0 %v1230
    %1849 = vmatpush2.bf16.msra.mxu0 %v1229
    %1850 = vmatprep.subr.bf16.mxu0 %v1226
    %1851 = vmatpush2.bf16.msra.mxu0 %v1225
    %1852 = vmatprep.subr.bf16.mxu0 %v1222
    %1853 = vmatpush2.bf16.msra.mxu0 %v1221
    %1854 = vmatprep.subr.bf16.mxu0 %v1218
    %1855 = vmatpush2.bf16.msra.mxu0 %v1217
    %1856 = vmatprep.subr.bf16.mxu0 %v1214
    %1857 = vmatpush2.bf16.msra.mxu0 %v1213
    %1858 = vmatprep.subr.bf16.mxu0 %v1210
    %1859 = vmatpush2.bf16.msra.mxu0 %v1209
    %1860 = vmatprep.mubr.bf16.mxu0 %v330
    %1861 = vmatmul.mubr.bf16.gmra.mxu0 %v329
    %v1862 = vpop.f32.mrf.mxu0
    %v1863 = vadd.f32 %v1822, %v1862
    %v1864 = vpop.f32.mrf.mxu0
    %v1865 = vadd.f32 %v1824, %v1864
    %v1866 = vpop.f32.mrf.mxu0
    %v1867 = vpop.f32.mrf.mxu0
    %1868 = vdwg.mxu0
    %1869 = vmatprep.subr.bf16.mxu0 %v1270
    %1870 = vmatpush1.bf16.msra.mxu0 %v1269
    %1871 = vmatprep.subr.bf16.mxu0 %v1266
    %1872 = vmatpush1.bf16.msra.mxu0 %v1265
    %1873 = vmatprep.subr.bf16.mxu0 %v1262
    %1874 = vmatpush1.bf16.msra.mxu0 %v1261
    %1875 = vmatprep.subr.bf16.mxu0 %v1258
    %1876 = vmatpush1.bf16.msra.mxu0 %v1257
    %1877 = vmatprep.subr.bf16.mxu0 %v1254
    %1878 = vmatpush1.bf16.msra.mxu0 %v1253
    %1879 = vmatprep.subr.bf16.mxu0 %v1250
    %1880 = vmatpush1.bf16.msra.mxu0 %v1249
    %1881 = vmatprep.subr.bf16.mxu0 %v1246
    %1882 = vmatpush1.bf16.msra.mxu0 %v1245
    %1883 = vmatprep.subr.bf16.mxu0 %v1242
    %1884 = vmatpush1.bf16.msra.mxu0 %v1241
    %1885 = vmatprep.subr.bf16.mxu0 %v1302
    %1886 = vmatpush2.bf16.msra.mxu0 %v1301
    %1887 = vmatprep.subr.bf16.mxu0 %v1298
    %1888 = vmatpush2.bf16.msra.mxu0 %v1297
    %1889 = vmatprep.subr.bf16.mxu0 %v1294
    %1890 = vmatpush2.bf16.msra.mxu0 %v1293
    %1891 = vmatprep.subr.bf16.mxu0 %v1290
    %1892 = vmatpush2.bf16.msra.mxu0 %v1289
    %1893 = vmatprep.subr.bf16.mxu0 %v1286
    %1894 = vmatpush2.bf16.msra.mxu0 %v1285
    %1895 = vmatprep.subr.bf16.mxu0 %v1282
    %1896 = vmatpush2.bf16.msra.mxu0 %v1281
    %1897 = vmatprep.subr.bf16.mxu0 %v1278
    %1898 = vmatpush2.bf16.msra.mxu0 %v1277
    %1899 = vmatprep.subr.bf16.mxu0 %v1274
    %1900 = vmatpush2.bf16.msra.mxu0 %v1273
    %1901 = vmatprep.mubr.bf16.mxu0 %v332
    %1902 = vmatmul.mubr.bf16.gmra.mxu0 %v331
    %v1903 = vpop.f32.mrf.mxu0
    %v1904 = vadd.f32 %v1863, %v1903
    %v1905 = vpop.f32.mrf.mxu0
    %v1906 = vadd.f32 %v1865, %v1905
    %v1907 = vpop.f32.mrf.mxu0
    %v1908 = vpop.f32.mrf.mxu0
    %1909 = vdwg.mxu0
    %1910 = vmatprep.subr.bf16.mxu0 %v1334
    %1911 = vmatpush1.bf16.msra.mxu0 %v1333
    %1912 = vmatprep.subr.bf16.mxu0 %v1330
    %1913 = vmatpush1.bf16.msra.mxu0 %v1329
    %1914 = vmatprep.subr.bf16.mxu0 %v1326
    %1915 = vmatpush1.bf16.msra.mxu0 %v1325
    %1916 = vmatprep.subr.bf16.mxu0 %v1322
    %1917 = vmatpush1.bf16.msra.mxu0 %v1321
    %1918 = vmatprep.subr.bf16.mxu0 %v1318
    %1919 = vmatpush1.bf16.msra.mxu0 %v1317
    %1920 = vmatprep.subr.bf16.mxu0 %v1314
    %1921 = vmatpush1.bf16.msra.mxu0 %v1313
    %1922 = vmatprep.subr.bf16.mxu0 %v1310
    %1923 = vmatpush1.bf16.msra.mxu0 %v1309
    %1924 = vmatprep.subr.bf16.mxu0 %v1306
    %1925 = vmatpush1.bf16.msra.mxu0 %v1305
    %1926 = vmatprep.subr.bf16.mxu0 %v1366
    %1927 = vmatpush2.bf16.msra.mxu0 %v1365
    %1928 = vmatprep.subr.bf16.mxu0 %v1362
    %1929 = vmatpush2.bf16.msra.mxu0 %v1361
    %1930 = vmatprep.subr.bf16.mxu0 %v1358
    %1931 = vmatpush2.bf16.msra.mxu0 %v1357
    %1932 = vmatprep.subr.bf16.mxu0 %v1354
    %1933 = vmatpush2.bf16.msra.mxu0 %v1353
    %1934 = vmatprep.subr.bf16.mxu0 %v1350
    %1935 = vmatpush2.bf16.msra.mxu0 %v1349
    %1936 = vmatprep.subr.bf16.mxu0 %v1346
    %1937 = vmatpush2.bf16.msra.mxu0 %v1345
    %1938 = vmatprep.subr.bf16.mxu0 %v1342
    %1939 = vmatpush2.bf16.msra.mxu0 %v1341
    %1940 = vmatprep.subr.bf16.mxu0 %v1338
    %1941 = vmatpush2.bf16.msra.mxu0 %v1337
    %1942 = vmatprep.mubr.bf16.mxu0 %v334
    %1943 = vmatmul.mubr.bf16.gmra.mxu0 %v333
    %v1944 = vpop.f32.mrf.mxu0
    %v1945 = vadd.f32 %v1904, %v1944
    %v1946 = vpop.f32.mrf.mxu0
    %v1947 = vadd.f32 %v1906, %v1946
    %v1948 = vpop.f32.mrf.mxu0
    %v1949 = vpop.f32.mrf.mxu0
    %1950 = vdwg.mxu0
    %v1951 = vld [vmem:[#allocation7] sm:$0xf]
    %v1952 = vld [vmem:[%s3] sm:$0xf]
    %v1954 = vlaneseq
    %v1955 = vshrl.u32 %v1954, 7
    %v1956 = vsub.s32 0, %v1955
    %v1957 = vrot.slane %v1951, %v1956
    %v1958 = vlaneseq
    %v1959 = vshrl.u32 %v1958, 7
    %v1960 = vsub.s32 1, %v1959
    %v1961 = vrot.slane %v1951, %v1960
    %v1962 = vlaneseq
    %v1963 = vshrl.u32 %v1962, 7
    %v1964 = vsub.s32 2, %v1963
    %v1965 = vrot.slane %v1951, %v1964
    %v1966 = vlaneseq
    %v1967 = vshrl.u32 %v1966, 7
    %v1968 = vsub.s32 3, %v1967
    %v1969 = vrot.slane %v1951, %v1968
    %v1974 = vmul.f32 %v1781, %v1957
    %v1975 = vmul.f32 %v1783, %v1961
    %v1976 = vmul.f32 %v1945, %v1965
    %v1977 = vmul.f32 %v1947, %v1969
    %v1979 = vlaneseq
    %v1980 = vshrl.u32 %v1979, 7
    %v1981 = vsub.s32 0, %v1980
    %v1982 = vrot.slane %v1952, %v1981
    %v1983 = vlaneseq
    %v1984 = vshrl.u32 %v1983, 7
    %v1985 = vsub.s32 1, %v1984
    %v1986 = vrot.slane %v1952, %v1985
    %v1987 = vlaneseq
    %v1988 = vshrl.u32 %v1987, 7
    %v1989 = vsub.s32 2, %v1988
    %v1990 = vrot.slane %v1952, %v1989
    %v1991 = vlaneseq
    %v1992 = vshrl.u32 %v1991, 7
    %v1993 = vsub.s32 3, %v1992
    %v1994 = vrot.slane %v1952, %v1993
    %v1999 = vadd.f32 %v1974, %v1982
    %v2000 = vadd.f32 %v1975, %v1986
    %v2001 = vadd.f32 %v1976, %v1990
    %v2002 = vadd.f32 %v1977, %v1994
    %v2003 = vmul.f32 %v1999, 0.1
    %v2004 = vmul.f32 %v2000, 0.1
    %v2005 = vmul.f32 %v2001, 0.1
    %v2006 = vmul.f32 %v2002, 0.1
    %v2007 = vmax.f32 %v1999, %v2003
    %v2008 = vmax.f32 %v2000, %v2004
    %v2009 = vmax.f32 %v2001, %v2005
    %v2010 = vmax.f32 %v2002, %v2006
    %2011 = vst [vmem:[#allocation8] sm:$0xff] %v2007
    %2012 = vst [vmem:[#allocation8 + $0x8] sm:$0xff] %v2008
    %2013 = vst [vmem:[#allocation8 + $0x10] sm:$0xff] %v2009
    %2014 = vst [vmem:[#allocation8 + $0x18] sm:$0xff] %v2010
    // Predicated region
    $region30: #{tpu_custom_call.1} parent=1 // pred_check
      _
    $region31: #{tpu_custom_call.1} parent=1 // pred_check_branch
      %2016 = sbr.rel (0) target = $region33
    $region32: #{tpu_custom_call.1} parent=1 // pred_region
      %s2018 = ssub.s32 512, 512
      %2019 = vsyncadd [#allocation4], %s2018
      %s2021 = sshll.u32 [#allocation8], 4
      %s2022 = int_to_ptr.vmem [resolvable:$true] %s2021
      %2024 = dma.vmem_to_hbm [thread:$0]  %s2022, 512, %s4, [#allocation4]
    $region33: #{tpu_custom_call.1} parent=1 // pred_fallthru
      _
    // Predicated region
    $region34: #{tpu_custom_call.1} parent=1 // pred_check
      _
    $region35: #{tpu_custom_call.1} parent=1 // pred_check_branch
      %2026 = sbr.rel (0) target = $region37
    $region36: #{tpu_custom_call.1} parent=1 // pred_region
      %2027 = dma.done [#allocation4], 512
    $region37: #{tpu_custom_call.1} parent=1 // pred_fallthru
      _
    %2028 = vsyncpa [#allocation3], 1
    %2029 = vsyncpa [#allocation6], 1
    %2030 = vsyncpa [#allocation4], 1

</llo_original>
